<compile_context>
chip_gen: v5e
topology: v5e:2x2
jax: 0.10.0
libtpu: 0.0.40
codegen_flags: <defaults>
</compile_context>

<pallas_src>
import jax
import jax.numpy as jnp
from jax.experimental import pallas as pl

# ---- small shapes consistent with the module ----
B, T = 2, 4        # batch, timesteps
S = 16             # n_stations
F = 8              # n_features
HG = 32            # hid_g
HFC = 64           # hid_fc
HL = 32            # hid_l
MULT = 2           # dist = 'norm'
BN_EPS = 1e-5
BT = B * T

# ---- row offsets inside the packed 128-lane slab (all f32) ----
R_ABD = 0                      # adj block-diag, BN-scale folded into columns   (128, 128)
R_APERM = R_ABD + BT * S       # adjacency with station-major output rows       (128, 128)
R_WIH = R_APERM + S * BT       # lstm W_ih                                      (32, 128)
R_WHH = R_WIH + HG             # lstm W_hh                                      (32, 128)
R_GW1 = R_WHH + HL             # gcn W1                                         (8, 32)
R_GW2 = R_GW1 + F              # gcn W2                                         (32, 32)
R_FC2W = R_GW2 + HG            # fc2 W                                          (64, 32)
R_B1EFF = R_FC2W + HFC         # effective GCN layer-1 bias (BN shift folded)   (128, 32)
R_BIAS = R_B1EFF + BT * S      # 8 rows of small biases
N_ROWS_128 = R_BIAS + 8        # = 560

# ---- row offsets inside the packed 64-lane slab (all f32) ----
RW64_FC1 = 0                   # fc1 W                                          (512, 64)
RW64_FC3 = RW64_FC1 + S * HG   # fc3 W                                          (32, 64)
RW64_FC4 = RW64_FC3 + HL       # fc4 W                                          (64, 64)
RW64_HEAD = RW64_FC4 + HFC     # [final(perm) | recent_mean | recent_var] W     (64, 64)
N_ROWS_64 = RW64_HEAD + HFC    # = 672


def _sigmoid(x):
    # numerically stable logistic via tanh (EUP slot, no exp overflow)
    return 0.5 * (jnp.tanh(0.5 * x) + 1.0)


def _softplus(x):
    # numerically stable softplus (torch's threshold=20 branch is subsumed)
    return jnp.maximum(x, 0.0) + jnp.log(1.0 + jnp.exp(-jnp.abs(x)))


# ---------------- the single fused kernel -------------------------------------------
def fused_kernel(x_ref, hist_ref, s128_ref, s64_ref, out_ref):
    def mm(a, b):
        return jnp.dot(a, b, preferred_element_type=jnp.float32)

    x = x_ref[...]                                                     # (BT*S, F)

    # --- static slab slices (free: ref.at-style static indexing) --------------------
    adj_bd = s128_ref[R_ABD:R_ABD + BT * S, :BT * S]                   # (128, 128)
    adj_pm = s128_ref[R_APERM:R_APERM + S * BT, :BT * S]               # (128, 128)
    gw1 = s128_ref[R_GW1:R_GW1 + F, :HG]                               # (8, 32)
    gw2 = s128_ref[R_GW2:R_GW2 + HG, :HG]                              # (32, 32)
    fc2w = s128_ref[R_FC2W:R_FC2W + HFC, :HG]                          # (64, 32)
    b1eff = s128_ref[R_B1EFF:R_B1EFF + BT * S, :HG]                    # (128, 32)
    gb2 = s128_ref[R_BIAS + 0:R_BIAS + 1, :HG]                         # (1, 32)
    fc1b = s128_ref[R_BIAS + 1:R_BIAS + 2, :HFC]                       # (1, 64)
    fc2b = s128_ref[R_BIAS + 2:R_BIAS + 3, :HG]                        # (1, 32)
    lb = s128_ref[R_BIAS + 3:R_BIAS + 4, :]                            # (1, 128)
    fc3b = s128_ref[R_BIAS + 4:R_BIAS + 5, :HFC]                       # (1, 64)
    fc4b = s128_ref[R_BIAS + 5:R_BIAS + 6, :HFC]                       # (1, 64)
    headb = s128_ref[R_BIAS + 6:R_BIAS + 7, :HFC]                      # (1, 64)
    wih = s128_ref[R_WIH:R_WIH + HG, :]                                # (32, 128)
    whh = s128_ref[R_WHH:R_WHH + HL, :]                                # (32, 128)

    # --- 2-layer GCN, batched over B*T samples; BatchNorm already folded ------------
    h = mm(adj_bd, x)                                                  # (BT*S, F)
    h = jnp.maximum(mm(h, gw1) + b1eff, 0.0)                           # (BT*S, HG)
    # dropout between the graph-conv layers is a no-op in eval mode
    h = mm(adj_pm, h)                                                  # (S*BT, HG), rows (s, n)
    h = mm(h, gw2) + gb2                                               # (S*BT, HG)

    # --- fc1 with the out.view(B, T, -1) station gather folded in --------------------
    # a1[n] = sum_s gcn_out[n, s, :] @ fc1_w[s*HG:(s+1)*HG, :]; each h row-block is a
    # single aligned 8-row slab, so no lane concat / relayout is needed.
    acc = jnp.zeros((BT, HFC), dtype=jnp.float32)
    for s in range(S):
        acc = acc + mm(h[s * BT:(s + 1) * BT, :],
                       s64_ref[RW64_FC1 + s * HG:RW64_FC1 + (s + 1) * HG, :])
    a1 = jnp.maximum(acc + fc1b, 0.0)                                  # (BT, HFC)
    l_in = jnp.maximum(mm(a1, fc2w) + fc2b, 0.0)                       # (BT, HG)

    # --- LSTM: input projection hoisted out of the recurrence ------------------------
    gates_x = mm(l_in, wih) + lb                                       # (BT, 4*HL)

    # nn.LSTM(hid_g, hid_l) with batch_first=False: seq axis = B, "batch" = T.
    # Only the h-dependent part stays serial; B == 2, statically unrolled.
    h_st = jnp.zeros((T, HL), dtype=jnp.float32)
    c_st = jnp.zeros((T, HL), dtype=jnp.float32)
    last_rows = []
    for b in range(B):
        gates = gates_x[b * T:(b + 1) * T, :] + mm(h_st, whh)          # (T, 4*HL) order i,f,g,o
        sg = _sigmoid(gates)                                           # full-width EUP
        tg = jnp.tanh(gates)
        i_g = sg[:, 0 * HL:1 * HL]
        f_g = sg[:, 1 * HL:2 * HL]
        g_g = tg[:, 2 * HL:3 * HL]
        o_g = sg[:, 3 * HL:4 * HL]
        c_st = f_g * c_st + i_g * g_g
        h_st = o_g * jnp.tanh(c_st)
        last_rows.append(h_st[T - 1:T, :])                             # torch out[:, -1, :] row b
    lstm_out = jnp.concatenate(last_rows, axis=0)                      # (B, HL)

    # --- head: fc3 -> fc4 -> one merged (final|mean|var) matmul -----------------------
    fc3w = s64_ref[RW64_FC3:RW64_FC3 + HL, :]                          # (32, 64)
    fc4w = s64_ref[RW64_FC4:RW64_FC4 + HFC, :]                         # (64, 64)
    headw = s64_ref[RW64_HEAD:RW64_HEAD + HFC, :]                      # (64, 64)

    a3 = jnp.maximum(mm(lstm_out, fc3w) + fc3b, 0.0)                   # (B, HFC)
    a4 = jnp.maximum(mm(a3, fc4w) + fc4b, 0.0)                         # (B, HFC)
    head = mm(a4, headw) + headb                                       # (B, 64)

    # columns: [mean-channel S | var-channel S | recent_mean S | recent_var S]
    mean_pre = head[:, 0:S]
    var_pre = head[:, S:2 * S]
    w_m = _sigmoid(head[:, 2 * S:3 * S])
    w_v = _sigmoid(head[:, 3 * S:4 * S])
    hist = hist_ref[...]                                               # (B, S)

    out_mean = _softplus(mean_pre + hist * w_m)
    out_var = _softplus(var_pre + hist * w_v)
    # dist='norm': torch.cat((out_mean, out_var), 0) -> single (2B, S) output slab
    out_ref[...] = jnp.concatenate([out_mean, out_var], axis=0)


# ---------------- forward: x reshape + one pallas_call (nothing else) ----------------
def gcn_lstm_forward(x, history, slab128, slab64):
    x_flat = x.reshape(BT * S, F)                                      # rows (n, s), n = b*T+t
    return pl.pallas_call(
        fused_kernel,
        out_shape=jax.ShapeDtypeStruct((MULT * B, S), jnp.float32),
    )(x_flat, history, slab128, slab64)


# ---------------- init-time packing: operators + constants -> 2 slabs ----------------
def prepare_packed(adj, p):
    f32 = jnp.float32
    scale = p["bn_scale"][:, 0]                                        # (S,)
    shift = p["bn_shift"][:, 0]                                        # (S,)

    eye_bt = jnp.eye(BT, dtype=f32)
    # BN scale folded into adjacency columns:  adj_s[:, s'] = adj[:, s'] * scale[s']
    adj_s = adj * scale[None, :]
    # A1[n*S+s, n'*S+s'] = delta(n,n') * adj_s[s,s']   (sample-major in & out)
    adj_bd_s = jnp.kron(eye_bt, adj_s)                                 # (BT*S, BT*S)
    # A2[s*BT+n, n'*S+s'] = delta(n,n') * adj[s,s']    (sample-major in, STATION-major out)
    adj_perm = (adj[:, None, None, :] * eye_bt[None, :, :, None]).reshape(S * BT, BT * S)

    # BN shift folded into an effective GCN layer-1 bias matrix
    ashift = adj @ shift                                               # (S,)
    colsum_w1 = jnp.sum(p["gcn_w1"], axis=0)                           # (HG,)
    b1_eff_s = ashift[:, None] * colsum_w1[None, :] + p["gcn_b1"]      # (S, HG)
    b1_eff = jnp.tile(b1_eff_s, (BT, 1))                               # (BT*S, HG), row n*S+s

    # merged head weight/bias: [final(perm cols) | recent_mean | recent_var]
    head_w = jnp.concatenate([p["final_w"], p["rm_w"], p["rv_w"]], axis=1)   # (HFC, 64)
    head_b = jnp.concatenate([p["final_b"], p["rm_b"], p["rv_b"]], axis=1)   # (1, 64)

    def pad128(w):
        return jnp.pad(w, ((0, 0), (0, 128 - w.shape[1])))

    slab128 = jnp.concatenate([
        adj_bd_s,                       # R_ABD
        adj_perm,                       # R_APERM
        p["lstm_wih"],                  # R_WIH
        p["lstm_whh"],                  # R_WHH
        pad128(p["gcn_w1"]),            # R_GW1
        pad128(p["gcn_w2"]),            # R_GW2
        pad128(p["fc2_w"]),             # R_FC2W
        pad128(b1_eff),                 # R_B1EFF
        pad128(p["gcn_b2"]),            # R_BIAS + 0
        pad128(p["fc1_b"]),             # R_BIAS + 1
        pad128(p["fc2_b"]),             # R_BIAS + 2
        p["lstm_b"],                    # R_BIAS + 3
        pad128(p["fc3_b"]),             # R_BIAS + 4
        pad128(p["fc4_b"]),             # R_BIAS + 5
        pad128(head_b),                 # R_BIAS + 6
        jnp.zeros((1, 128), f32),       # padding row
    ], axis=0)
    assert slab128.shape == (N_ROWS_128, 128), slab128.shape

    slab64 = jnp.concatenate([
        p["fc1_w"],                     # RW64_FC1
        p["fc3_w"],                     # RW64_FC3
        p["fc4_w"],                     # RW64_FC4
        head_w,                         # RW64_HEAD
    ], axis=0)
    assert slab64.shape == (N_ROWS_64, 64), slab64.shape
    return slab128, slab64


# ---------------- pure-JAX reference (same semantics, no Pallas, no folding) ----------
def reference_forward(x, adj, history, p):
    scale = p["bn_scale"][:, 0]
    shift = p["bn_shift"][:, 0]
    xn = x * scale[None, None, :, None] + shift[None, None, :, None]   # (B,T,S,F)
    h = jnp.einsum('ij,btjf->btif', adj, xn)
    h = jax.nn.relu(jnp.einsum('btsf,fg->btsg', h, p["gcn_w1"]) + p["gcn_b1"][0])
    h = jnp.einsum('ij,btjg->btig', adj, h)
    h = jnp.einsum('btsg,gh->btsh', h, p["gcn_w2"]) + p["gcn_b2"][0]   # (B,T,S,HG)
    z = h.reshape(B, T, S * HG)
    a1 = jax.nn.relu(z @ p["fc1_w"] + p["fc1_b"][0])
    l_in = jax.nn.relu(a1 @ p["fc2_w"] + p["fc2_b"][0])                # (B,T,HG)
    h_st = jnp.zeros((T, HL), jnp.float32)
    c_st = jnp.zeros((T, HL), jnp.float32)
    lasts = []
    for b in range(B):
        gates = l_in[b] @ p["lstm_wih"] + p["lstm_b"][0] + h_st @ p["lstm_whh"]
        i_g = jax.nn.sigmoid(gates[:, :HL])
        f_g = jax.nn.sigmoid(gates[:, HL:2 * HL])
        g_g = jnp.tanh(gates[:, 2 * HL:3 * HL])
        o_g = jax.nn.sigmoid(gates[:, 3 * HL:])
        c_st = f_g * c_st + i_g * g_g
        h_st = o_g * jnp.tanh(c_st)
        lasts.append(h_st[T - 1])
    lstm_out = jnp.stack(lasts, axis=0)                                # (B, HL)
    a3 = jax.nn.relu(lstm_out @ p["fc3_w"] + p["fc3_b"][0])
    a4 = jax.nn.relu(a3 @ p["fc4_w"] + p["fc4_b"][0])
    gl = a4 @ p["final_w"] + p["final_b"][0]                           # (B, 2S), permuted cols
    w_m = jax.nn.sigmoid(a4 @ p["rm_w"] + p["rm_b"][0])
    w_v = jax.nn.sigmoid(a4 @ p["rv_w"] + p["rv_b"][0])
    out_mean = jax.nn.softplus(gl[:, :S] + history * w_m)
    out_var = jax.nn.softplus(gl[:, S:] + history * w_v)
    return jnp.concatenate([out_mean, out_var], axis=0)


def init_params(key):
    ks = iter(jax.random.split(key, 40))

    def nrm(shape, scale=0.1):
        return scale * jax.random.normal(next(ks), shape, dtype=jnp.float32)

    p = {}
    # BatchNorm1d(n_stations), eval mode -> fold into per-station scale/shift
    gamma = 1.0 + nrm((S,))
    beta = nrm((S,))
    rmean = nrm((S,))
    rvar = 1.0 + jnp.abs(nrm((S,)))
    scale = gamma / jnp.sqrt(rvar + BN_EPS)
    p["bn_scale"] = scale.reshape(S, 1)
    p["bn_shift"] = (beta - rmean * scale).reshape(S, 1)
    # GCNLayer (assumed standard 2-layer Kipf GCN)
    p["gcn_w1"] = nrm((F, HG)); p["gcn_b1"] = nrm((1, HG))
    p["gcn_w2"] = nrm((HG, HG)); p["gcn_b2"] = nrm((1, HG))
    # fc1 / fc2
    p["fc1_w"] = nrm((S * HG, HFC)); p["fc1_b"] = nrm((1, HFC))
    p["fc2_w"] = nrm((HFC, HG)); p["fc2_b"] = nrm((1, HG))
    # LSTM(hid_g, hid_l); gate order i,f,g,o ; combined bias = b_ih + b_hh
    p["lstm_wih"] = nrm((HG, 4 * HL)); p["lstm_whh"] = nrm((HL, 4 * HL))
    p["lstm_b"] = nrm((1, 4 * HL))
    # fc3 / fc4
    p["fc3_w"] = nrm((HL, HFC)); p["fc3_b"] = nrm((1, HFC))
    p["fc4_w"] = nrm((HFC, HFC)); p["fc4_b"] = nrm((1, HFC))
    # final: Linear(hid_fc, n_stations*mult); permute columns so the torch
    # view(B, S, mult) channels become contiguous [mean | var] lane slices
    fw = nrm((HFC, S * MULT)); fb = nrm((1, S * MULT))
    perm = jnp.concatenate([jnp.arange(S) * MULT, jnp.arange(S) * MULT + 1])
    p["final_w"] = fw[:, perm]; p["final_b"] = fb[:, perm]
    # recent_on_history_{mean,var}
    p["rm_w"] = nrm((HFC, S)); p["rm_b"] = nrm((1, S))
    p["rv_w"] = nrm((HFC, S)); p["rv_b"] = nrm((1, S))
    return p


if __name__ == "__main__":
    key = jax.random.PRNGKey(0)
    k_p, k_x, k_a, k_h = jax.random.split(key, 4)

    params = init_params(k_p)
    x = jax.random.normal(k_x, (B, T, S, F), dtype=jnp.float32)
    # row-normalized adjacency with self loops
    a_raw = jnp.abs(jax.random.normal(k_a, (S, S), dtype=jnp.float32)) + jnp.eye(S, dtype=jnp.float32)
    adj = a_raw / jnp.sum(a_raw, axis=1, keepdims=True)
    history = jnp.abs(jax.random.normal(k_h, (B, S), dtype=jnp.float32)) * 5.0

    # One-time init: fold BN, build batched adjacency operators, pack everything
    # into two constant slabs (hoisted out of the per-call forward).
    slab128, slab64 = prepare_packed(adj, params)
    slab128 = jax.block_until_ready(jax.device_put(slab128))
    slab64 = jax.block_until_ready(jax.device_put(slab64))

    fwd = jax.jit(gcn_lstm_forward)
    out = jax.block_until_ready(fwd(x, history, slab128, slab64))

    assert out.shape == (2 * B, S), out.shape
    assert bool(jnp.all(jnp.isfinite(out)))

    # correctness vs. a plain-JAX f32 reference of the same forward semantics
    ref = jax.block_until_ready(reference_forward(x, adj, history, params))
    assert bool(jnp.allclose(out, ref, rtol=1e-3, atol=1e-3)), float(jnp.max(jnp.abs(out - ref)))

    print("KERNEL_OK")
</pallas_src>

<mosaic_0001>
module attributes {stable_mosaic.version = 11 : i64} {
  func.func @fused_kernel(%arg0: memref<128x8xf32, #tpu.memory_space<vmem>>, %arg1: memref<2x16xf32, #tpu.memory_space<vmem>>, %arg2: memref<560x128xf32, #tpu.memory_space<vmem>>, %arg3: memref<672x64xf32, #tpu.memory_space<vmem>>, %arg4: memref<4x16xf32, #tpu.memory_space<vmem>>) attributes {dimension_semantics = [], scalar_prefetch = 0 : i64, scratch_operands = 0 : i64, tpu.core_type = #tpu.core_type<tc>} {
    %c0 = arith.constant 0 : index
    %c0_0 = arith.constant 0 : index
    %0 = vector.load %arg0[%c0, %c0_0] : memref<128x8xf32, #tpu.memory_space<vmem>>, vector<128x8xf32>
    %c0_1 = arith.constant 0 : index
    %c0_2 = arith.constant 0 : index
    %1 = vector.load %arg2[%c0_1, %c0_2] : memref<560x128xf32, #tpu.memory_space<vmem>>, vector<128x128xf32>
    %c128 = arith.constant 128 : index
    %c0_3 = arith.constant 0 : index
    %2 = vector.load %arg2[%c128, %c0_3] : memref<560x128xf32, #tpu.memory_space<vmem>>, vector<128x128xf32>
    %c320 = arith.constant 320 : index
    %c0_4 = arith.constant 0 : index
    %3 = vector.load %arg2[%c320, %c0_4] : memref<560x128xf32, #tpu.memory_space<vmem>>, vector<8x32xf32>
    %c328 = arith.constant 328 : index
    %c0_5 = arith.constant 0 : index
    %4 = vector.load %arg2[%c328, %c0_5] : memref<560x128xf32, #tpu.memory_space<vmem>>, vector<32x32xf32>
    %c360 = arith.constant 360 : index
    %c0_6 = arith.constant 0 : index
    %5 = vector.load %arg2[%c360, %c0_6] : memref<560x128xf32, #tpu.memory_space<vmem>>, vector<64x32xf32>
    %c424 = arith.constant 424 : index
    %c0_7 = arith.constant 0 : index
    %6 = vector.load %arg2[%c424, %c0_7] : memref<560x128xf32, #tpu.memory_space<vmem>>, vector<128x32xf32>
    %c552 = arith.constant 552 : index
    %c0_8 = arith.constant 0 : index
    %7 = vector.load %arg2[%c552, %c0_8] : memref<560x128xf32, #tpu.memory_space<vmem>>, vector<1x32xf32>
    %c553 = arith.constant 553 : index
    %c0_9 = arith.constant 0 : index
    %8 = vector.load %arg2[%c553, %c0_9] : memref<560x128xf32, #tpu.memory_space<vmem>>, vector<1x64xf32>
    %c554 = arith.constant 554 : index
    %c0_10 = arith.constant 0 : index
    %9 = vector.load %arg2[%c554, %c0_10] : memref<560x128xf32, #tpu.memory_space<vmem>>, vector<1x32xf32>
    %c555 = arith.constant 555 : index
    %c0_11 = arith.constant 0 : index
    %10 = vector.load %arg2[%c555, %c0_11] : memref<560x128xf32, #tpu.memory_space<vmem>>, vector<1x128xf32>
    %c556 = arith.constant 556 : index
    %c0_12 = arith.constant 0 : index
    %11 = vector.load %arg2[%c556, %c0_12] : memref<560x128xf32, #tpu.memory_space<vmem>>, vector<1x64xf32>
    %c557 = arith.constant 557 : index
    %c0_13 = arith.constant 0 : index
    %12 = vector.load %arg2[%c557, %c0_13] : memref<560x128xf32, #tpu.memory_space<vmem>>, vector<1x64xf32>
    %c558 = arith.constant 558 : index
    %c0_14 = arith.constant 0 : index
    %13 = vector.load %arg2[%c558, %c0_14] : memref<560x128xf32, #tpu.memory_space<vmem>>, vector<1x64xf32>
    %c256 = arith.constant 256 : index
    %c0_15 = arith.constant 0 : index
    %14 = vector.load %arg2[%c256, %c0_15] : memref<560x128xf32, #tpu.memory_space<vmem>>, vector<32x128xf32>
    %c288 = arith.constant 288 : index
    %c0_16 = arith.constant 0 : index
    %15 = vector.load %arg2[%c288, %c0_16] : memref<560x128xf32, #tpu.memory_space<vmem>>, vector<32x128xf32>
    %cst = arith.constant dense<0.000000e+00> : vector<128x8xf32>
    %16 = tpu.matmul %1, %0, %cst {dimension_numbers = #tpu.dot_dimension_numbers<[1], [0], [0], [1], [0, 0, 1, 1], [], []>} : vector<128x128xf32>, vector<128x8xf32>, vector<128x8xf32> -> vector<128x8xf32>
    %cst_17 = arith.constant dense<0.000000e+00> : vector<128x32xf32>
    %17 = tpu.matmul %16, %3, %cst_17 {dimension_numbers = #tpu.dot_dimension_numbers<[1], [0], [0], [1], [0, 0, 1, 1], [], []>} : vector<128x8xf32>, vector<8x32xf32>, vector<128x32xf32> -> vector<128x32xf32>
    %18 = arith.addf %17, %6 : vector<128x32xf32>
    %cst_18 = arith.constant 0.000000e+00 : f32
    %19 = vector.broadcast %cst_18 : f32 to vector<128x32xf32>
    %20 = arith.maximumf %18, %19 : vector<128x32xf32>
    %cst_19 = arith.constant dense<0.000000e+00> : vector<128x32xf32>
    %21 = tpu.matmul %2, %20, %cst_19 {dimension_numbers = #tpu.dot_dimension_numbers<[1], [0], [0], [1], [0, 0, 1, 1], [], []>} : vector<128x128xf32>, vector<128x32xf32>, vector<128x32xf32> -> vector<128x32xf32>
    %cst_20 = arith.constant dense<0.000000e+00> : vector<128x32xf32>
    %22 = tpu.matmul %21, %4, %cst_20 {dimension_numbers = #tpu.dot_dimension_numbers<[1], [0], [0], [1], [0, 0, 1, 1], [], []>} : vector<128x32xf32>, vector<32x32xf32>, vector<128x32xf32> -> vector<128x32xf32>
    %23 = vector.broadcast %7 : vector<1x32xf32> to vector<128x32xf32>
    %24 = arith.addf %22, %23 : vector<128x32xf32>
    %cst_21 = arith.constant 0.000000e+00 : f32
    %25 = vector.broadcast %cst_21 : f32 to vector<8x64xf32>
    %26 = vector.extract_strided_slice %24 {offsets = [0, 0], sizes = [8, 32], strides = [1, 1]} : vector<128x32xf32> to vector<8x32xf32>
    %c0_22 = arith.constant 0 : index
    %c0_23 = arith.constant 0 : index
    %27 = vector.load %arg3[%c0_22, %c0_23] : memref<672x64xf32, #tpu.memory_space<vmem>>, vector<32x64xf32>
    %cst_24 = arith.constant dense<0.000000e+00> : vector<8x64xf32>
    %28 = tpu.matmul %26, %27, %cst_24 {dimension_numbers = #tpu.dot_dimension_numbers<[1], [0], [0], [1], [0, 0, 1, 1], [], []>} : vector<8x32xf32>, vector<32x64xf32>, vector<8x64xf32> -> vector<8x64xf32>
    %29 = arith.addf %25, %28 : vector<8x64xf32>
    %30 = vector.extract_strided_slice %24 {offsets = [8, 0], sizes = [8, 32], strides = [1, 1]} : vector<128x32xf32> to vector<8x32xf32>
    %c32 = arith.constant 32 : index
    %c0_25 = arith.constant 0 : index
    %31 = vector.load %arg3[%c32, %c0_25] : memref<672x64xf32, #tpu.memory_space<vmem>>, vector<32x64xf32>
    %cst_26 = arith.constant dense<0.000000e+00> : vector<8x64xf32>
    %32 = tpu.matmul %30, %31, %cst_26 {dimension_numbers = #tpu.dot_dimension_numbers<[1], [0], [0], [1], [0, 0, 1, 1], [], []>} : vector<8x32xf32>, vector<32x64xf32>, vector<8x64xf32> -> vector<8x64xf32>
    %33 = arith.addf %29, %32 : vector<8x64xf32>
    %34 = vector.extract_strided_slice %24 {offsets = [16, 0], sizes = [8, 32], strides = [1, 1]} : vector<128x32xf32> to vector<8x32xf32>
    %c64 = arith.constant 64 : index
    %c0_27 = arith.constant 0 : index
    %35 = vector.load %arg3[%c64, %c0_27] : memref<672x64xf32, #tpu.memory_space<vmem>>, vector<32x64xf32>
    %cst_28 = arith.constant dense<0.000000e+00> : vector<8x64xf32>
    %36 = tpu.matmul %34, %35, %cst_28 {dimension_numbers = #tpu.dot_dimension_numbers<[1], [0], [0], [1], [0, 0, 1, 1], [], []>} : vector<8x32xf32>, vector<32x64xf32>, vector<8x64xf32> -> vector<8x64xf32>
    %37 = arith.addf %33, %36 : vector<8x64xf32>
    %38 = vector.extract_strided_slice %24 {offsets = [24, 0], sizes = [8, 32], strides = [1, 1]} : vector<128x32xf32> to vector<8x32xf32>
    %c96 = arith.constant 96 : index
    %c0_29 = arith.constant 0 : index
    %39 = vector.load %arg3[%c96, %c0_29] : memref<672x64xf32, #tpu.memory_space<vmem>>, vector<32x64xf32>
    %cst_30 = arith.constant dense<0.000000e+00> : vector<8x64xf32>
    %40 = tpu.matmul %38, %39, %cst_30 {dimension_numbers = #tpu.dot_dimension_numbers<[1], [0], [0], [1], [0, 0, 1, 1], [], []>} : vector<8x32xf32>, vector<32x64xf32>, vector<8x64xf32> -> vector<8x64xf32>
    %41 = arith.addf %37, %40 : vector<8x64xf32>
    %42 = vector.extract_strided_slice %24 {offsets = [32, 0], sizes = [8, 32], strides = [1, 1]} : vector<128x32xf32> to vector<8x32xf32>
    %c128_31 = arith.constant 128 : index
    %c0_32 = arith.constant 0 : index
    %43 = vector.load %arg3[%c128_31, %c0_32] : memref<672x64xf32, #tpu.memory_space<vmem>>, vector<32x64xf32>
    %cst_33 = arith.constant dense<0.000000e+00> : vector<8x64xf32>
    %44 = tpu.matmul %42, %43, %cst_33 {dimension_numbers = #tpu.dot_dimension_numbers<[1], [0], [0], [1], [0, 0, 1, 1], [], []>} : vector<8x32xf32>, vector<32x64xf32>, vector<8x64xf32> -> vector<8x64xf32>
    %45 = arith.addf %41, %44 : vector<8x64xf32>
    %46 = vector.extract_strided_slice %24 {offsets = [40, 0], sizes = [8, 32], strides = [1, 1]} : vector<128x32xf32> to vector<8x32xf32>
    %c160 = arith.constant 160 : index
    %c0_34 = arith.constant 0 : index
    %47 = vector.load %arg3[%c160, %c0_34] : memref<672x64xf32, #tpu.memory_space<vmem>>, vector<32x64xf32>
    %cst_35 = arith.constant dense<0.000000e+00> : vector<8x64xf32>
    %48 = tpu.matmul %46, %47, %cst_35 {dimension_numbers = #tpu.dot_dimension_numbers<[1], [0], [0], [1], [0, 0, 1, 1], [], []>} : vector<8x32xf32>, vector<32x64xf32>, vector<8x64xf32> -> vector<8x64xf32>
    %49 = arith.addf %45, %48 : vector<8x64xf32>
    %50 = vector.extract_strided_slice %24 {offsets = [48, 0], sizes = [8, 32], strides = [1, 1]} : vector<128x32xf32> to vector<8x32xf32>
    %c192 = arith.constant 192 : index
    %c0_36 = arith.constant 0 : index
    %51 = vector.load %arg3[%c192, %c0_36] : memref<672x64xf32, #tpu.memory_space<vmem>>, vector<32x64xf32>
    %cst_37 = arith.constant dense<0.000000e+00> : vector<8x64xf32>
    %52 = tpu.matmul %50, %51, %cst_37 {dimension_numbers = #tpu.dot_dimension_numbers<[1], [0], [0], [1], [0, 0, 1, 1], [], []>} : vector<8x32xf32>, vector<32x64xf32>, vector<8x64xf32> -> vector<8x64xf32>
    %53 = arith.addf %49, %52 : vector<8x64xf32>
    %54 = vector.extract_strided_slice %24 {offsets = [56, 0], sizes = [8, 32], strides = [1, 1]} : vector<128x32xf32> to vector<8x32xf32>
    %c224 = arith.constant 224 : index
    %c0_38 = arith.constant 0 : index
    %55 = vector.load %arg3[%c224, %c0_38] : memref<672x64xf32, #tpu.memory_space<vmem>>, vector<32x64xf32>
    %cst_39 = arith.constant dense<0.000000e+00> : vector<8x64xf32>
    %56 = tpu.matmul %54, %55, %cst_39 {dimension_numbers = #tpu.dot_dimension_numbers<[1], [0], [0], [1], [0, 0, 1, 1], [], []>} : vector<8x32xf32>, vector<32x64xf32>, vector<8x64xf32> -> vector<8x64xf32>
    %57 = arith.addf %53, %56 : vector<8x64xf32>
    %58 = vector.extract_strided_slice %24 {offsets = [64, 0], sizes = [8, 32], strides = [1, 1]} : vector<128x32xf32> to vector<8x32xf32>
    %c256_40 = arith.constant 256 : index
    %c0_41 = arith.constant 0 : index
    %59 = vector.load %arg3[%c256_40, %c0_41] : memref<672x64xf32, #tpu.memory_space<vmem>>, vector<32x64xf32>
    %cst_42 = arith.constant dense<0.000000e+00> : vector<8x64xf32>
    %60 = tpu.matmul %58, %59, %cst_42 {dimension_numbers = #tpu.dot_dimension_numbers<[1], [0], [0], [1], [0, 0, 1, 1], [], []>} : vector<8x32xf32>, vector<32x64xf32>, vector<8x64xf32> -> vector<8x64xf32>
    %61 = arith.addf %57, %60 : vector<8x64xf32>
    %62 = vector.extract_strided_slice %24 {offsets = [72, 0], sizes = [8, 32], strides = [1, 1]} : vector<128x32xf32> to vector<8x32xf32>
    %c288_43 = arith.constant 288 : index
    %c0_44 = arith.constant 0 : index
    %63 = vector.load %arg3[%c288_43, %c0_44] : memref<672x64xf32, #tpu.memory_space<vmem>>, vector<32x64xf32>
    %cst_45 = arith.constant dense<0.000000e+00> : vector<8x64xf32>
    %64 = tpu.matmul %62, %63, %cst_45 {dimension_numbers = #tpu.dot_dimension_numbers<[1], [0], [0], [1], [0, 0, 1, 1], [], []>} : vector<8x32xf32>, vector<32x64xf32>, vector<8x64xf32> -> vector<8x64xf32>
    %65 = arith.addf %61, %64 : vector<8x64xf32>
    %66 = vector.extract_strided_slice %24 {offsets = [80, 0], sizes = [8, 32], strides = [1, 1]} : vector<128x32xf32> to vector<8x32xf32>
    %c320_46 = arith.constant 320 : index
    %c0_47 = arith.constant 0 : index
    %67 = vector.load %arg3[%c320_46, %c0_47] : memref<672x64xf32, #tpu.memory_space<vmem>>, vector<32x64xf32>
    %cst_48 = arith.constant dense<0.000000e+00> : vector<8x64xf32>
    %68 = tpu.matmul %66, %67, %cst_48 {dimension_numbers = #tpu.dot_dimension_numbers<[1], [0], [0], [1], [0, 0, 1, 1], [], []>} : vector<8x32xf32>, vector<32x64xf32>, vector<8x64xf32> -> vector<8x64xf32>
    %69 = arith.addf %65, %68 : vector<8x64xf32>
    %70 = vector.extract_strided_slice %24 {offsets = [88, 0], sizes = [8, 32], strides = [1, 1]} : vector<128x32xf32> to vector<8x32xf32>
    %c352 = arith.constant 352 : index
    %c0_49 = arith.constant 0 : index
    %71 = vector.load %arg3[%c352, %c0_49] : memref<672x64xf32, #tpu.memory_space<vmem>>, vector<32x64xf32>
    %cst_50 = arith.constant dense<0.000000e+00> : vector<8x64xf32>
    %72 = tpu.matmul %70, %71, %cst_50 {dimension_numbers = #tpu.dot_dimension_numbers<[1], [0], [0], [1], [0, 0, 1, 1], [], []>} : vector<8x32xf32>, vector<32x64xf32>, vector<8x64xf32> -> vector<8x64xf32>
    %73 = arith.addf %69, %72 : vector<8x64xf32>
    %74 = vector.extract_strided_slice %24 {offsets = [96, 0], sizes = [8, 32], strides = [1, 1]} : vector<128x32xf32> to vector<8x32xf32>
    %c384 = arith.constant 384 : index
    %c0_51 = arith.constant 0 : index
    %75 = vector.load %arg3[%c384, %c0_51] : memref<672x64xf32, #tpu.memory_space<vmem>>, vector<32x64xf32>
    %cst_52 = arith.constant dense<0.000000e+00> : vector<8x64xf32>
    %76 = tpu.matmul %74, %75, %cst_52 {dimension_numbers = #tpu.dot_dimension_numbers<[1], [0], [0], [1], [0, 0, 1, 1], [], []>} : vector<8x32xf32>, vector<32x64xf32>, vector<8x64xf32> -> vector<8x64xf32>
    %77 = arith.addf %73, %76 : vector<8x64xf32>
    %78 = vector.extract_strided_slice %24 {offsets = [104, 0], sizes = [8, 32], strides = [1, 1]} : vector<128x32xf32> to vector<8x32xf32>
    %c416 = arith.constant 416 : index
    %c0_53 = arith.constant 0 : index
    %79 = vector.load %arg3[%c416, %c0_53] : memref<672x64xf32, #tpu.memory_space<vmem>>, vector<32x64xf32>
    %cst_54 = arith.constant dense<0.000000e+00> : vector<8x64xf32>
    %80 = tpu.matmul %78, %79, %cst_54 {dimension_numbers = #tpu.dot_dimension_numbers<[1], [0], [0], [1], [0, 0, 1, 1], [], []>} : vector<8x32xf32>, vector<32x64xf32>, vector<8x64xf32> -> vector<8x64xf32>
    %81 = arith.addf %77, %80 : vector<8x64xf32>
    %82 = vector.extract_strided_slice %24 {offsets = [112, 0], sizes = [8, 32], strides = [1, 1]} : vector<128x32xf32> to vector<8x32xf32>
    %c448 = arith.constant 448 : index
    %c0_55 = arith.constant 0 : index
    %83 = vector.load %arg3[%c448, %c0_55] : memref<672x64xf32, #tpu.memory_space<vmem>>, vector<32x64xf32>
    %cst_56 = arith.constant dense<0.000000e+00> : vector<8x64xf32>
    %84 = tpu.matmul %82, %83, %cst_56 {dimension_numbers = #tpu.dot_dimension_numbers<[1], [0], [0], [1], [0, 0, 1, 1], [], []>} : vector<8x32xf32>, vector<32x64xf32>, vector<8x64xf32> -> vector<8x64xf32>
    %85 = arith.addf %81, %84 : vector<8x64xf32>
    %86 = vector.extract_strided_slice %24 {offsets = [120, 0], sizes = [8, 32], strides = [1, 1]} : vector<128x32xf32> to vector<8x32xf32>
    %c480 = arith.constant 480 : index
    %c0_57 = arith.constant 0 : index
    %87 = vector.load %arg3[%c480, %c0_57] : memref<672x64xf32, #tpu.memory_space<vmem>>, vector<32x64xf32>
    %cst_58 = arith.constant dense<0.000000e+00> : vector<8x64xf32>
    %88 = tpu.matmul %86, %87, %cst_58 {dimension_numbers = #tpu.dot_dimension_numbers<[1], [0], [0], [1], [0, 0, 1, 1], [], []>} : vector<8x32xf32>, vector<32x64xf32>, vector<8x64xf32> -> vector<8x64xf32>
    %89 = arith.addf %85, %88 : vector<8x64xf32>
    %90 = vector.broadcast %8 : vector<1x64xf32> to vector<8x64xf32>
    %91 = arith.addf %89, %90 : vector<8x64xf32>
    %cst_59 = arith.constant 0.000000e+00 : f32
    %92 = vector.broadcast %cst_59 : f32 to vector<8x64xf32>
    %93 = arith.maximumf %91, %92 : vector<8x64xf32>
    %cst_60 = arith.constant dense<0.000000e+00> : vector<8x32xf32>
    %94 = tpu.matmul %93, %5, %cst_60 {dimension_numbers = #tpu.dot_dimension_numbers<[1], [0], [0], [1], [0, 0, 1, 1], [], []>} : vector<8x64xf32>, vector<64x32xf32>, vector<8x32xf32> -> vector<8x32xf32>
    %95 = vector.broadcast %9 : vector<1x32xf32> to vector<8x32xf32>
    %96 = arith.addf %94, %95 : vector<8x32xf32>
    %cst_61 = arith.constant 0.000000e+00 : f32
    %97 = vector.broadcast %cst_61 : f32 to vector<8x32xf32>
    %98 = arith.maximumf %96, %97 : vector<8x32xf32>
    %cst_62 = arith.constant dense<0.000000e+00> : vector<8x128xf32>
    %99 = tpu.matmul %98, %14, %cst_62 {dimension_numbers = #tpu.dot_dimension_numbers<[1], [0], [0], [1], [0, 0, 1, 1], [], []>} : vector<8x32xf32>, vector<32x128xf32>, vector<8x128xf32> -> vector<8x128xf32>
    %100 = vector.broadcast %10 : vector<1x128xf32> to vector<8x128xf32>
    %101 = arith.addf %99, %100 : vector<8x128xf32>
    %cst_63 = arith.constant 0.000000e+00 : f32
    %102 = vector.broadcast %cst_63 : f32 to vector<4x32xf32>
    %cst_64 = arith.constant 0.000000e+00 : f32
    %103 = vector.broadcast %cst_64 : f32 to vector<4x32xf32>
    %104 = vector.extract_strided_slice %101 {offsets = [0, 0], sizes = [4, 128], strides = [1, 1]} : vector<8x128xf32> to vector<4x128xf32>
    %cst_65 = arith.constant dense<0.000000e+00> : vector<4x128xf32>
    %105 = tpu.matmul %102, %15, %cst_65 {dimension_numbers = #tpu.dot_dimension_numbers<[1], [0], [0], [1], [0, 0, 1, 1], [], []>} : vector<4x32xf32>, vector<32x128xf32>, vector<4x128xf32> -> vector<4x128xf32>
    %106 = arith.addf %104, %105 : vector<4x128xf32>
    %cst_66 = arith.constant 5.000000e-01 : f32
    %107 = vector.broadcast %cst_66 : f32 to vector<4x128xf32>
    %108 = arith.mulf %107, %106 : vector<4x128xf32>
    %109 = math.tanh %108 : vector<4x128xf32>
    %cst_67 = arith.constant 1.000000e+00 : f32
    %110 = vector.broadcast %cst_67 : f32 to vector<4x128xf32>
    %111 = arith.addf %109, %110 : vector<4x128xf32>
    %cst_68 = arith.constant 5.000000e-01 : f32
    %112 = vector.broadcast %cst_68 : f32 to vector<4x128xf32>
    %113 = arith.mulf %112, %111 : vector<4x128xf32>
    %114 = math.tanh %106 : vector<4x128xf32>
    %115 = vector.extract_strided_slice %113 {offsets = [0, 0], sizes = [4, 32], strides = [1, 1]} : vector<4x128xf32> to vector<4x32xf32>
    %116 = vector.extract_strided_slice %113 {offsets = [0, 32], sizes = [4, 32], strides = [1, 1]} : vector<4x128xf32> to vector<4x32xf32>
    %117 = vector.extract_strided_slice %114 {offsets = [0, 64], sizes = [4, 32], strides = [1, 1]} : vector<4x128xf32> to vector<4x32xf32>
    %118 = vector.extract_strided_slice %113 {offsets = [0, 96], sizes = [4, 32], strides = [1, 1]} : vector<4x128xf32> to vector<4x32xf32>
    %119 = arith.mulf %116, %103 : vector<4x32xf32>
    %120 = arith.mulf %115, %117 : vector<4x32xf32>
    %121 = arith.addf %119, %120 : vector<4x32xf32>
    %122 = math.tanh %121 : vector<4x32xf32>
    %123 = arith.mulf %118, %122 : vector<4x32xf32>
    %124 = vector.extract_strided_slice %123 {offsets = [3, 0], sizes = [1, 32], strides = [1, 1]} : vector<4x32xf32> to vector<1x32xf32>
    %125 = vector.extract_strided_slice %101 {offsets = [4, 0], sizes = [4, 128], strides = [1, 1]} : vector<8x128xf32> to vector<4x128xf32>
    %cst_69 = arith.constant dense<0.000000e+00> : vector<4x128xf32>
    %126 = tpu.matmul %123, %15, %cst_69 {dimension_numbers = #tpu.dot_dimension_numbers<[1], [0], [0], [1], [0, 0, 1, 1], [], []>} : vector<4x32xf32>, vector<32x128xf32>, vector<4x128xf32> -> vector<4x128xf32>
    %127 = arith.addf %125, %126 : vector<4x128xf32>
    %cst_70 = arith.constant 5.000000e-01 : f32
    %128 = vector.broadcast %cst_70 : f32 to vector<4x128xf32>
    %129 = arith.mulf %128, %127 : vector<4x128xf32>
    %130 = math.tanh %129 : vector<4x128xf32>
    %cst_71 = arith.constant 1.000000e+00 : f32
    %131 = vector.broadcast %cst_71 : f32 to vector<4x128xf32>
    %132 = arith.addf %130, %131 : vector<4x128xf32>
    %cst_72 = arith.constant 5.000000e-01 : f32
    %133 = vector.broadcast %cst_72 : f32 to vector<4x128xf32>
    %134 = arith.mulf %133, %132 : vector<4x128xf32>
    %135 = math.tanh %127 : vector<4x128xf32>
    %136 = vector.extract_strided_slice %134 {offsets = [0, 0], sizes = [4, 32], strides = [1, 1]} : vector<4x128xf32> to vector<4x32xf32>
    %137 = vector.extract_strided_slice %134 {offsets = [0, 32], sizes = [4, 32], strides = [1, 1]} : vector<4x128xf32> to vector<4x32xf32>
    %138 = vector.extract_strided_slice %135 {offsets = [0, 64], sizes = [4, 32], strides = [1, 1]} : vector<4x128xf32> to vector<4x32xf32>
    %139 = vector.extract_strided_slice %134 {offsets = [0, 96], sizes = [4, 32], strides = [1, 1]} : vector<4x128xf32> to vector<4x32xf32>
    %140 = arith.mulf %137, %121 : vector<4x32xf32>
    %141 = arith.mulf %136, %138 : vector<4x32xf32>
    %142 = arith.addf %140, %141 : vector<4x32xf32>
    %143 = math.tanh %142 : vector<4x32xf32>
    %144 = arith.mulf %139, %143 : vector<4x32xf32>
    %145 = vector.extract_strided_slice %144 {offsets = [3, 0], sizes = [1, 32], strides = [1, 1]} : vector<4x32xf32> to vector<1x32xf32>
    %146 = tpu.concatenate %124, %145 in 0 : vector<1x32xf32>, vector<1x32xf32> -> vector<2x32xf32>
    %c512 = arith.constant 512 : index
    %c0_73 = arith.constant 0 : index
    %147 = vector.load %arg3[%c512, %c0_73] : memref<672x64xf32, #tpu.memory_space<vmem>>, vector<32x64xf32>
    %c544 = arith.constant 544 : index
    %c0_74 = arith.constant 0 : index
    %148 = vector.load %arg3[%c544, %c0_74] : memref<672x64xf32, #tpu.memory_space<vmem>>, vector<64x64xf32>
    %c608 = arith.constant 608 : index
    %c0_75 = arith.constant 0 : index
    %149 = vector.load %arg3[%c608, %c0_75] : memref<672x64xf32, #tpu.memory_space<vmem>>, vector<64x64xf32>
    %cst_76 = arith.constant dense<0.000000e+00> : vector<2x64xf32>
    %150 = tpu.matmul %146, %147, %cst_76 {dimension_numbers = #tpu.dot_dimension_numbers<[1], [0], [0], [1], [0, 0, 1, 1], [], []>} : vector<2x32xf32>, vector<32x64xf32>, vector<2x64xf32> -> vector<2x64xf32>
    %151 = vector.broadcast %11 : vector<1x64xf32> to vector<2x64xf32>
    %152 = arith.addf %150, %151 : vector<2x64xf32>
    %cst_77 = arith.constant 0.000000e+00 : f32
    %153 = vector.broadcast %cst_77 : f32 to vector<2x64xf32>
    %154 = arith.maximumf %152, %153 : vector<2x64xf32>
    %cst_78 = arith.constant dense<0.000000e+00> : vector<2x64xf32>
    %155 = tpu.matmul %154, %148, %cst_78 {dimension_numbers = #tpu.dot_dimension_numbers<[1], [0], [0], [1], [0, 0, 1, 1], [], []>} : vector<2x64xf32>, vector<64x64xf32>, vector<2x64xf32> -> vector<2x64xf32>
    %156 = vector.broadcast %12 : vector<1x64xf32> to vector<2x64xf32>
    %157 = arith.addf %155, %156 : vector<2x64xf32>
    %cst_79 = arith.constant 0.000000e+00 : f32
    %158 = vector.broadcast %cst_79 : f32 to vector<2x64xf32>
    %159 = arith.maximumf %157, %158 : vector<2x64xf32>
    %cst_80 = arith.constant dense<0.000000e+00> : vector<2x64xf32>
    %160 = tpu.matmul %159, %149, %cst_80 {dimension_numbers = #tpu.dot_dimension_numbers<[1], [0], [0], [1], [0, 0, 1, 1], [], []>} : vector<2x64xf32>, vector<64x64xf32>, vector<2x64xf32> -> vector<2x64xf32>
    %161 = vector.broadcast %13 : vector<1x64xf32> to vector<2x64xf32>
    %162 = arith.addf %160, %161 : vector<2x64xf32>
    %163 = vector.extract_strided_slice %162 {offsets = [0, 0], sizes = [2, 16], strides = [1, 1]} : vector<2x64xf32> to vector<2x16xf32>
    %164 = vector.extract_strided_slice %162 {offsets = [0, 16], sizes = [2, 16], strides = [1, 1]} : vector<2x64xf32> to vector<2x16xf32>
    %165 = vector.extract_strided_slice %162 {offsets = [0, 32], sizes = [2, 16], strides = [1, 1]} : vector<2x64xf32> to vector<2x16xf32>
    %cst_81 = arith.constant 5.000000e-01 : f32
    %166 = vector.broadcast %cst_81 : f32 to vector<2x16xf32>
    %167 = arith.mulf %166, %165 : vector<2x16xf32>
    %168 = math.tanh %167 : vector<2x16xf32>
    %cst_82 = arith.constant 1.000000e+00 : f32
    %169 = vector.broadcast %cst_82 : f32 to vector<2x16xf32>
    %170 = arith.addf %168, %169 : vector<2x16xf32>
    %cst_83 = arith.constant 5.000000e-01 : f32
    %171 = vector.broadcast %cst_83 : f32 to vector<2x16xf32>
    %172 = arith.mulf %171, %170 : vector<2x16xf32>
    %173 = vector.extract_strided_slice %162 {offsets = [0, 48], sizes = [2, 16], strides = [1, 1]} : vector<2x64xf32> to vector<2x16xf32>
    %cst_84 = arith.constant 5.000000e-01 : f32
    %174 = vector.broadcast %cst_84 : f32 to vector<2x16xf32>
    %175 = arith.mulf %174, %173 : vector<2x16xf32>
    %176 = math.tanh %175 : vector<2x16xf32>
    %cst_85 = arith.constant 1.000000e+00 : f32
    %177 = vector.broadcast %cst_85 : f32 to vector<2x16xf32>
    %178 = arith.addf %176, %177 : vector<2x16xf32>
    %cst_86 = arith.constant 5.000000e-01 : f32
    %179 = vector.broadcast %cst_86 : f32 to vector<2x16xf32>
    %180 = arith.mulf %179, %178 : vector<2x16xf32>
    %c0_87 = arith.constant 0 : index
    %c0_88 = arith.constant 0 : index
    %181 = vector.load %arg1[%c0_87, %c0_88] : memref<2x16xf32, #tpu.memory_space<vmem>>, vector<2x16xf32>
    %182 = arith.mulf %181, %172 : vector<2x16xf32>
    %183 = arith.addf %163, %182 : vector<2x16xf32>
    %cst_89 = arith.constant 0.000000e+00 : f32
    %184 = vector.broadcast %cst_89 : f32 to vector<2x16xf32>
    %185 = arith.maximumf %183, %184 : vector<2x16xf32>
    %186 = math.absf %183 : vector<2x16xf32>
    %cst_90 = arith.constant 0.000000e+00 : f32
    %187 = vector.broadcast %cst_90 : f32 to vector<2x16xf32>
    %188 = arith.subf %187, %186 : vector<2x16xf32>
    %189 = math.exp %188 : vector<2x16xf32>
    %cst_91 = arith.constant 1.000000e+00 : f32
    %190 = vector.broadcast %cst_91 : f32 to vector<2x16xf32>
    %191 = arith.addf %190, %189 : vector<2x16xf32>
    %192 = math.log %191 : vector<2x16xf32>
    %193 = arith.addf %185, %192 : vector<2x16xf32>
    %194 = arith.mulf %181, %180 : vector<2x16xf32>
    %195 = arith.addf %164, %194 : vector<2x16xf32>
    %cst_92 = arith.constant 0.000000e+00 : f32
    %196 = vector.broadcast %cst_92 : f32 to vector<2x16xf32>
    %197 = arith.maximumf %195, %196 : vector<2x16xf32>
    %198 = math.absf %195 : vector<2x16xf32>
    %cst_93 = arith.constant 0.000000e+00 : f32
    %199 = vector.broadcast %cst_93 : f32 to vector<2x16xf32>
    %200 = arith.subf %199, %198 : vector<2x16xf32>
    %201 = math.exp %200 : vector<2x16xf32>
    %cst_94 = arith.constant 1.000000e+00 : f32
    %202 = vector.broadcast %cst_94 : f32 to vector<2x16xf32>
    %203 = arith.addf %202, %201 : vector<2x16xf32>
    %204 = math.log %203 : vector<2x16xf32>
    %205 = arith.addf %197, %204 : vector<2x16xf32>
    %206 = tpu.concatenate %193, %205 in 0 : vector<2x16xf32>, vector<2x16xf32> -> vector<4x16xf32>
    %c0_95 = arith.constant 0 : index
    %c0_96 = arith.constant 0 : index
    %207 = vector.load %arg4[%c0_95, %c0_96] : memref<4x16xf32, #tpu.memory_space<vmem>>, vector<4x16xf32>
    tpu.vector_store %arg4[%c0_95, %c0_96], %206 {strides = array<i32>} : memref<4x16xf32, #tpu.memory_space<vmem>>, vector<4x16xf32>,
    return
  }
}

</mosaic_0001>

<llo_original>
// kernel: gcn_lstm_forward.1
$region0: #{gcn_lstm_forward.1}
  #allocation0 [shape = 'u32[]', space=smem, size = 0x4, offset = 0x4, fixed_abs, tag = 'smem constant byte address 0x4 - core index']
  #allocation1 [shape = 'u32[72,128]{1,0:T(1,128)}', space=vmem, size = 0x9000, scoped, tag = 'internal scratch']
  %s0 = inlined_call_operand.vmem [shape: f32[128,8], index: 0, kind: input, shape index: {}]
  %s1 = inlined_call_operand.vmem [shape: f32[2,16], index: 1, kind: input, shape index: {}]
  %s2 = inlined_call_operand.vmem [shape: f32[560,128], index: 2, kind: input, shape index: {}]
  %s3 = inlined_call_operand.vmem [shape: f32[672,64], index: 3, kind: input, shape index: {}]
  %s4 = inlined_call_operand.hbm [shape: f32[4,16], index: 4, kind: output, shape index: {}]
  %s5 = sld [smem:[#allocation0]]
  $region26: #{gcn_lstm_forward.1} parent=0
    _
  %s7 = ssub.s32 1, %s5
  %s8 = scalar_select 0, %s7, %s5
  $region1: #{gcn_lstm_forward.1} parent=0
    #allocation2 [shape = 'u8[2048]{0}', space=vmem, size = 0x800, scoped, tag = 'output window, operand 0, single buffered']
    #allocation3 [shape = 's32[1]{0}', space=sflag, size = 0x4, scoped, tag = 'scoped memory for gcn_lstm_forward.1']
    %9 = vsyncpa [#allocation3], 0
    // Predicated region
    $region2: #{gcn_lstm_forward.1} parent=1 // pred_check
      _
    $region3: #{gcn_lstm_forward.1} parent=1 // pred_check_branch
      %11 = sbr.rel (0) target = $region5
    $region4: #{gcn_lstm_forward.1} parent=1 // pred_region
      _
    $region5: #{gcn_lstm_forward.1} parent=1 // pred_fallthru
      _
    // Predicated region
    $region6: #{gcn_lstm_forward.1} parent=1 // pred_check
      _
    $region7: #{gcn_lstm_forward.1} parent=1 // pred_check_branch
      %13 = sbr.rel (0) target = $region9
    $region8: #{gcn_lstm_forward.1} parent=1 // pred_region
      _
    $region9: #{gcn_lstm_forward.1} parent=1 // pred_fallthru
      _
    // Predicated region
    $region10: #{gcn_lstm_forward.1} parent=1 // pred_check
      _
    $region11: #{gcn_lstm_forward.1} parent=1 // pred_check_branch
      %15 = sbr.rel (0) target = $region13
    $region12: #{gcn_lstm_forward.1} parent=1 // pred_region
      _
    $region13: #{gcn_lstm_forward.1} parent=1 // pred_fallthru
      _
    // Predicated region
    $region14: #{gcn_lstm_forward.1} parent=1 // pred_check
      _
    $region15: #{gcn_lstm_forward.1} parent=1 // pred_check_branch
      %17 = sbr.rel (0) target = $region17
    $region16: #{gcn_lstm_forward.1} parent=1 // pred_region
      _
    $region17: #{gcn_lstm_forward.1} parent=1 // pred_fallthru
      _
    %v18 = vld [vmem:[%s0] sm:$0xff]
    %v19 = vld [vmem:[%s0 + $0x8] sm:$0xff]
    %v20 = vld [vmem:[%s0 + $0x10] sm:$0xff]
    %v21 = vld [vmem:[%s0 + $0x18] sm:$0xff]
    %v22 = vld [vmem:[%s0 + $0x20] sm:$0xff]
    %v23 = vld [vmem:[%s0 + $0x28] sm:$0xff]
    %v24 = vld [vmem:[%s0 + $0x30] sm:$0xff]
    %v25 = vld [vmem:[%s0 + $0x38] sm:$0xff]
    %v26 = vld [vmem:[%s0 + $0x40] sm:$0xff]
    %v27 = vld [vmem:[%s0 + $0x48] sm:$0xff]
    %v28 = vld [vmem:[%s0 + $0x50] sm:$0xff]
    %v29 = vld [vmem:[%s0 + $0x58] sm:$0xff]
    %v30 = vld [vmem:[%s0 + $0x60] sm:$0xff]
    %v31 = vld [vmem:[%s0 + $0x68] sm:$0xff]
    %v32 = vld [vmem:[%s0 + $0x70] sm:$0xff]
    %v33 = vld [vmem:[%s0 + $0x78] sm:$0xff]
    %v34 = vld [vmem:[%s2] sm:$0xff]
    %v35 = vld [vmem:[%s2 + $0x8] sm:$0xff]
    %v36 = vld [vmem:[%s2 + $0x10] sm:$0xff]
    %v37 = vld [vmem:[%s2 + $0x18] sm:$0xff]
    %v38 = vld [vmem:[%s2 + $0x20] sm:$0xff]
    %v39 = vld [vmem:[%s2 + $0x28] sm:$0xff]
    %v40 = vld [vmem:[%s2 + $0x30] sm:$0xff]
    %v41 = vld [vmem:[%s2 + $0x38] sm:$0xff]
    %v42 = vld [vmem:[%s2 + $0x40] sm:$0xff]
    %v43 = vld [vmem:[%s2 + $0x48] sm:$0xff]
    %v44 = vld [vmem:[%s2 + $0x50] sm:$0xff]
    %v45 = vld [vmem:[%s2 + $0x58] sm:$0xff]
    %v46 = vld [vmem:[%s2 + $0x60] sm:$0xff]
    %v47 = vld [vmem:[%s2 + $0x68] sm:$0xff]
    %v48 = vld [vmem:[%s2 + $0x70] sm:$0xff]
    %v49 = vld [vmem:[%s2 + $0x78] sm:$0xff]
    %v50 = vld [vmem:[%s2 + $0x80] sm:$0xff]
    %v51 = vld [vmem:[%s2 + $0x88] sm:$0xff]
    %v52 = vld [vmem:[%s2 + $0x90] sm:$0xff]
    %v53 = vld [vmem:[%s2 + $0x98] sm:$0xff]
    %v54 = vld [vmem:[%s2 + $0xa0] sm:$0xff]
    %v55 = vld [vmem:[%s2 + $0xa8] sm:$0xff]
    %v56 = vld [vmem:[%s2 + $0xb0] sm:$0xff]
    %v57 = vld [vmem:[%s2 + $0xb8] sm:$0xff]
    %v58 = vld [vmem:[%s2 + $0xc0] sm:$0xff]
    %v59 = vld [vmem:[%s2 + $0xc8] sm:$0xff]
    %v60 = vld [vmem:[%s2 + $0xd0] sm:$0xff]
    %v61 = vld [vmem:[%s2 + $0xd8] sm:$0xff]
    %v62 = vld [vmem:[%s2 + $0xe0] sm:$0xff]
    %v63 = vld [vmem:[%s2 + $0xe8] sm:$0xff]
    %v64 = vld [vmem:[%s2 + $0xf0] sm:$0xff]
    %v65 = vld [vmem:[%s2 + $0xf8] sm:$0xff]
    %v66 = vld [vmem:[%s2 + $0x140] sm:$0xff]
    %v67 = vld [vmem:[%s2 + $0x148] sm:$0xff]
    %v68 = vld [vmem:[%s2 + $0x150] sm:$0xff]
    %v69 = vld [vmem:[%s2 + $0x158] sm:$0xff]
    %v70 = vld [vmem:[%s2 + $0x160] sm:$0xff]
    %v71 = vld [vmem:[%s2 + $0x168] sm:$0xff]
    %v72 = vld [vmem:[%s2 + $0x170] sm:$0xff]
    %v73 = vld [vmem:[%s2 + $0x178] sm:$0xff]
    %v74 = vld [vmem:[%s2 + $0x180] sm:$0xff]
    %v75 = vld [vmem:[%s2 + $0x188] sm:$0xff]
    %v76 = vld [vmem:[%s2 + $0x190] sm:$0xff]
    %v77 = vld [vmem:[%s2 + $0x198] sm:$0xff]
    %v78 = vld [vmem:[%s2 + $0x1a0] sm:$0xff]
    %v79 = vld [vmem:[%s2 + $0x1a8] sm:$0xff]
    %v80 = vld [vmem:[%s2 + $0x1b0] sm:$0xff]
    %v81 = vld [vmem:[%s2 + $0x1b8] sm:$0xff]
    %v82 = vld [vmem:[%s2 + $0x1c0] sm:$0xff]
    %v83 = vld [vmem:[%s2 + $0x1c8] sm:$0xff]
    %v84 = vld [vmem:[%s2 + $0x1d0] sm:$0xff]
    %v85 = vld [vmem:[%s2 + $0x1d8] sm:$0xff]
    %v86 = vld [vmem:[%s2 + $0x1e0] sm:$0xff]
    %v87 = vld [vmem:[%s2 + $0x1e8] sm:$0xff]
    %v88 = vld [vmem:[%s2 + $0x1f0] sm:$0xff]
    %v89 = vld [vmem:[%s2 + $0x1f8] sm:$0xff]
    %v90 = vld [vmem:[%s2 + $0x200] sm:$0xff]
    %v91 = vld [vmem:[%s2 + $0x208] sm:$0xff]
    %v92 = vld [vmem:[%s2 + $0x210] sm:$0xff]
    %v93 = vld [vmem:[%s2 + $0x218] sm:$0xff]
    %v94 = vld [vmem:[%s2 + $0x220] sm:$0xff]
    %v95 = vld [vmem:[%s2 + $0x228] sm:$0x1]
    %v96 = vld [vmem:[%s2 + $0x229] sm:$0x1]
    %v97 = vld [vmem:[%s2 + $0x22a] sm:$0x1]
    %v98 = vld [vmem:[%s2 + $0x22b] sm:$0x1]
    %v99 = vld [vmem:[%s2 + $0x22c] sm:$0x1]
    %v100 = vld [vmem:[%s2 + $0x22d] sm:$0x1]
    %v101 = vld [vmem:[%s2 + $0x22e] sm:$0x1]
    %v102 = vld [vmem:[%s2 + $0x100] sm:$0xff]
    %v103 = vld [vmem:[%s2 + $0x108] sm:$0xff]
    %v104 = vld [vmem:[%s2 + $0x110] sm:$0xff]
    %v105 = vld [vmem:[%s2 + $0x118] sm:$0xff]
    %v106 = vld [vmem:[%s2 + $0x120] sm:$0xff]
    %v107 = vld [vmem:[%s2 + $0x128] sm:$0xff]
    %v108 = vld [vmem:[%s2 + $0x130] sm:$0xff]
    %v109 = vld [vmem:[%s2 + $0x138] sm:$0xff]
    %110 = vmatpush.msra.mxu0 %v33
    %111 = vmatpush.msra.mxu0 %v32
    %112 = vmatpush.msra.mxu0 %v31
    %113 = vmatpush.msra.mxu0 %v30
    %114 = vmatpush.msra.mxu0 %v29
    %115 = vmatpush.msra.mxu0 %v28
    %116 = vmatpush.msra.mxu0 %v27
    %117 = vmatpush.msra.mxu0 %v26
    %118 = vmatpush.msra.mxu0 %v25
    %119 = vmatpush.msra.mxu0 %v24
    %120 = vmatpush.msra.mxu0 %v23
    %121 = vmatpush.msra.mxu0 %v22
    %122 = vmatpush.msra.mxu0 %v21
    %123 = vmatpush.msra.mxu0 %v20
    %124 = vmatpush.msra.mxu0 %v19
    %125 = vmatpush.msra.mxu0 %v18
    %126 = vmatmul.f32.gmra.mxu0 %v34
    %v127 = vpop.f32.mrf.mxu0
    %v128 = vadd.f32 0.0, %v127
    %129 = vmatmul.f32.gmra.mxu0 %v35
    %v130 = vpop.f32.mrf.mxu0
    %v131 = vadd.f32 0.0, %v130
    %132 = vmatmul.f32.gmra.mxu0 %v36
    %v133 = vpop.f32.mrf.mxu0
    %v134 = vadd.f32 0.0, %v133
    %135 = vmatmul.f32.gmra.mxu0 %v37
    %v136 = vpop.f32.mrf.mxu0
    %v137 = vadd.f32 0.0, %v136
    %138 = vmatmul.f32.gmra.mxu0 %v38
    %v139 = vpop.f32.mrf.mxu0
    %v140 = vadd.f32 0.0, %v139
    %141 = vmatmul.f32.gmra.mxu0 %v39
    %v142 = vpop.f32.mrf.mxu0
    %v143 = vadd.f32 0.0, %v142
    %144 = vmatmul.f32.gmra.mxu0 %v40
    %v145 = vpop.f32.mrf.mxu0
    %v146 = vadd.f32 0.0, %v145
    %147 = vmatmul.f32.gmra.mxu0 %v41
    %v148 = vpop.f32.mrf.mxu0
    %v149 = vadd.f32 0.0, %v148
    %150 = vmatmul.f32.gmra.mxu0 %v42
    %v151 = vpop.f32.mrf.mxu0
    %v152 = vadd.f32 0.0, %v151
    %153 = vmatmul.f32.gmra.mxu0 %v43
    %v154 = vpop.f32.mrf.mxu0
    %v155 = vadd.f32 0.0, %v154
    %156 = vmatmul.f32.gmra.mxu0 %v44
    %v157 = vpop.f32.mrf.mxu0
    %v158 = vadd.f32 0.0, %v157
    %159 = vmatmul.f32.gmra.mxu0 %v45
    %v160 = vpop.f32.mrf.mxu0
    %v161 = vadd.f32 0.0, %v160
    %162 = vmatmul.f32.gmra.mxu0 %v46
    %v163 = vpop.f32.mrf.mxu0
    %v164 = vadd.f32 0.0, %v163
    %165 = vmatmul.f32.gmra.mxu0 %v47
    %v166 = vpop.f32.mrf.mxu0
    %v167 = vadd.f32 0.0, %v166
    %168 = vmatmul.f32.gmra.mxu0 %v48
    %v169 = vpop.f32.mrf.mxu0
    %v170 = vadd.f32 0.0, %v169
    %171 = vmatmul.f32.gmra.mxu0 %v49
    %v172 = vpop.f32.mrf.mxu0
    %v173 = vadd.f32 0.0, %v172
    %174 = vdwg.mxu0
    %vm175 = vcmask 64512
    %v177 = vsel %vm175, %v128, 0
    %v180 = vsel %vm175, %v131, 0
    %v183 = vsel %vm175, %v134, 0
    %v186 = vsel %vm175, %v137, 0
    %v189 = vsel %vm175, %v140, 0
    %v192 = vsel %vm175, %v143, 0
    %v195 = vsel %vm175, %v146, 0
    %v198 = vsel %vm175, %v149, 0
    %v201 = vsel %vm175, %v152, 0
    %v204 = vsel %vm175, %v155, 0
    %v207 = vsel %vm175, %v158, 0
    %v210 = vsel %vm175, %v161, 0
    %v213 = vsel %vm175, %v164, 0
    %v216 = vsel %vm175, %v167, 0
    %v219 = vsel %vm175, %v170, 0
    %v222 = vsel %vm175, %v173, 0
    %224 = vmatpush.msra.mxu0 0.0
    %225 = vmatpush.msra.mxu0 0.0
    %226 = vmatpush.msra.mxu0 0.0
    %227 = vmatpush.msra.mxu0 0.0
    %228 = vmatpush.msra.mxu0 0.0
    %229 = vmatpush.msra.mxu0 0.0
    %230 = vmatpush.msra.mxu0 0.0
    %231 = vmatpush.msra.mxu0 0.0
    %232 = vmatpush.msra.mxu0 0.0
    %233 = vmatpush.msra.mxu0 0.0
    %234 = vmatpush.msra.mxu0 0.0
    %235 = vmatpush.msra.mxu0 0.0
    %236 = vmatpush.msra.mxu0 0.0
    %237 = vmatpush.msra.mxu0 0.0
    %238 = vmatpush.msra.mxu0 0.0
    %239 = vmatpush.msra.mxu0 %v66
    %240 = vmatmul.f32.gmra.mxu0 %v177
    %v241 = vpop.f32.mrf.mxu0
    %v242 = vadd.f32 %v79, %v241
    %243 = vmatmul.f32.gmra.mxu0 %v180
    %v244 = vpop.f32.mrf.mxu0
    %v245 = vadd.f32 %v80, %v244
    %246 = vmatmul.f32.gmra.mxu0 %v183
    %v247 = vpop.f32.mrf.mxu0
    %v248 = vadd.f32 %v81, %v247
    %249 = vmatmul.f32.gmra.mxu0 %v186
    %v250 = vpop.f32.mrf.mxu0
    %v251 = vadd.f32 %v82, %v250
    %252 = vmatmul.f32.gmra.mxu0 %v189
    %v253 = vpop.f32.mrf.mxu0
    %v254 = vadd.f32 %v83, %v253
    %255 = vmatmul.f32.gmra.mxu0 %v192
    %v256 = vpop.f32.mrf.mxu0
    %v257 = vadd.f32 %v84, %v256
    %258 = vmatmul.f32.gmra.mxu0 %v195
    %v259 = vpop.f32.mrf.mxu0
    %v260 = vadd.f32 %v85, %v259
    %261 = vmatmul.f32.gmra.mxu0 %v198
    %v262 = vpop.f32.mrf.mxu0
    %v263 = vadd.f32 %v86, %v262
    %264 = vmatmul.f32.gmra.mxu0 %v201
    %v265 = vpop.f32.mrf.mxu0
    %v266 = vadd.f32 %v87, %v265
    %267 = vmatmul.f32.gmra.mxu0 %v204
    %v268 = vpop.f32.mrf.mxu0
    %v269 = vadd.f32 %v88, %v268
    %270 = vmatmul.f32.gmra.mxu0 %v207
    %v271 = vpop.f32.mrf.mxu0
    %v272 = vadd.f32 %v89, %v271
    %273 = vmatmul.f32.gmra.mxu0 %v210
    %v274 = vpop.f32.mrf.mxu0
    %v275 = vadd.f32 %v90, %v274
    %276 = vmatmul.f32.gmra.mxu0 %v213
    %v277 = vpop.f32.mrf.mxu0
    %v278 = vadd.f32 %v91, %v277
    %279 = vmatmul.f32.gmra.mxu0 %v216
    %v280 = vpop.f32.mrf.mxu0
    %v281 = vadd.f32 %v92, %v280
    %282 = vmatmul.f32.gmra.mxu0 %v219
    %v283 = vpop.f32.mrf.mxu0
    %v284 = vadd.f32 %v93, %v283
    %285 = vmatmul.f32.gmra.mxu0 %v222
    %v286 = vpop.f32.mrf.mxu0
    %v287 = vadd.f32 %v94, %v286
    %288 = vdwg.mxu0
    %v289 = vmax.f32 %v242, 0.0
    %v290 = vmax.f32 %v245, 0.0
    %v291 = vmax.f32 %v248, 0.0
    %v292 = vmax.f32 %v251, 0.0
    %v293 = vmax.f32 %v254, 0.0
    %v294 = vmax.f32 %v257, 0.0
    %v295 = vmax.f32 %v260, 0.0
    %v296 = vmax.f32 %v263, 0.0
    %v297 = vmax.f32 %v266, 0.0
    %v298 = vmax.f32 %v269, 0.0
    %v299 = vmax.f32 %v272, 0.0
    %v300 = vmax.f32 %v275, 0.0
    %v301 = vmax.f32 %v278, 0.0
    %v302 = vmax.f32 %v281, 0.0
    %v303 = vmax.f32 %v284, 0.0
    %v304 = vmax.f32 %v287, 0.0
    %305 = vmatpush.msra.mxu0 %v304
    %306 = vmatpush.msra.mxu0 %v303
    %307 = vmatpush.msra.mxu0 %v302
    %308 = vmatpush.msra.mxu0 %v301
    %309 = vmatpush.msra.mxu0 %v300
    %310 = vmatpush.msra.mxu0 %v299
    %311 = vmatpush.msra.mxu0 %v298
    %312 = vmatpush.msra.mxu0 %v297
    %313 = vmatpush.msra.mxu0 %v296
    %314 = vmatpush.msra.mxu0 %v295
    %315 = vmatpush.msra.mxu0 %v294
    %316 = vmatpush.msra.mxu0 %v293
    %317 = vmatpush.msra.mxu0 %v292
    %318 = vmatpush.msra.mxu0 %v291
    %319 = vmatpush.msra.mxu0 %v290
    %320 = vmatpush.msra.mxu0 %v289
    %321 = vmatmul.f32.gmra.mxu0 %v50
    %v322 = vpop.f32.mrf.mxu0
    %v323 = vadd.f32 0.0, %v322
    %324 = vmatmul.f32.gmra.mxu0 %v51
    %v325 = vpop.f32.mrf.mxu0
    %v326 = vadd.f32 0.0, %v325
    %327 = vmatmul.f32.gmra.mxu0 %v52
    %v328 = vpop.f32.mrf.mxu0
    %v329 = vadd.f32 0.0, %v328
    %330 = vmatmul.f32.gmra.mxu0 %v53
    %v331 = vpop.f32.mrf.mxu0
    %v332 = vadd.f32 0.0, %v331
    %333 = vmatmul.f32.gmra.mxu0 %v54
    %v334 = vpop.f32.mrf.mxu0
    %v335 = vadd.f32 0.0, %v334
    %336 = vmatmul.f32.gmra.mxu0 %v55
    %v337 = vpop.f32.mrf.mxu0
    %v338 = vadd.f32 0.0, %v337
    %339 = vmatmul.f32.gmra.mxu0 %v56
    %v340 = vpop.f32.mrf.mxu0
    %v341 = vadd.f32 0.0, %v340
    %342 = vmatmul.f32.gmra.mxu0 %v57
    %v343 = vpop.f32.mrf.mxu0
    %v344 = vadd.f32 0.0, %v343
    %345 = vmatmul.f32.gmra.mxu0 %v58
    %v346 = vpop.f32.mrf.mxu0
    %v347 = vadd.f32 0.0, %v346
    %348 = vmatmul.f32.gmra.mxu0 %v59
    %v349 = vpop.f32.mrf.mxu0
    %v350 = vadd.f32 0.0, %v349
    %351 = vmatmul.f32.gmra.mxu0 %v60
    %v352 = vpop.f32.mrf.mxu0
    %v353 = vadd.f32 0.0, %v352
    %354 = vmatmul.f32.gmra.mxu0 %v61
    %v355 = vpop.f32.mrf.mxu0
    %v356 = vadd.f32 0.0, %v355
    %357 = vmatmul.f32.gmra.mxu0 %v62
    %v358 = vpop.f32.mrf.mxu0
    %v359 = vadd.f32 0.0, %v358
    %360 = vmatmul.f32.gmra.mxu0 %v63
    %v361 = vpop.f32.mrf.mxu0
    %v362 = vadd.f32 0.0, %v361
    %363 = vmatmul.f32.gmra.mxu0 %v64
    %v364 = vpop.f32.mrf.mxu0
    %v365 = vadd.f32 0.0, %v364
    %366 = vmatmul.f32.gmra.mxu0 %v65
    %v367 = vpop.f32.mrf.mxu0
    %v368 = vadd.f32 0.0, %v367
    %369 = vdwg.mxu0
    %v370 = vperm.slane %v95, 0
    %vm371 = vcmask 261120
    %v373 = vsel %vm371, %v323, 0
    %v376 = vsel %vm371, %v326, 0
    %v379 = vsel %vm371, %v329, 0
    %v382 = vsel %vm371, %v332, 0
    %v385 = vsel %vm371, %v335, 0
    %v388 = vsel %vm371, %v338, 0
    %v391 = vsel %vm371, %v341, 0
    %v394 = vsel %vm371, %v344, 0
    %v397 = vsel %vm371, %v347, 0
    %v400 = vsel %vm371, %v350, 0
    %v403 = vsel %vm371, %v353, 0
    %v406 = vsel %vm371, %v356, 0
    %v409 = vsel %vm371, %v359, 0
    %v412 = vsel %vm371, %v362, 0
    %v415 = vsel %vm371, %v365, 0
    %v418 = vsel %vm371, %v368, 0
    %420 = vmatpush.msra.mxu0 0.0
    %421 = vmatpush.msra.mxu0 0.0
    %422 = vmatpush.msra.mxu0 0.0
    %423 = vmatpush.msra.mxu0 0.0
    %424 = vmatpush.msra.mxu0 0.0
    %425 = vmatpush.msra.mxu0 0.0
    %426 = vmatpush.msra.mxu0 0.0
    %427 = vmatpush.msra.mxu0 0.0
    %428 = vmatpush.msra.mxu0 0.0
    %429 = vmatpush.msra.mxu0 0.0
    %430 = vmatpush.msra.mxu0 0.0
    %431 = vmatpush.msra.mxu0 0.0
    %432 = vmatpush.msra.mxu0 %v70
    %433 = vmatpush.msra.mxu0 %v69
    %434 = vmatpush.msra.mxu0 %v68
    %435 = vmatpush.msra.mxu0 %v67
    %436 = vmatmul.f32.gmra.mxu0 %v373
    %v437 = vpop.f32.mrf.mxu0
    %v438 = vadd.f32 %v370, %v437
    %439 = vmatmul.f32.gmra.mxu0 %v376
    %v440 = vpop.f32.mrf.mxu0
    %v441 = vadd.f32 %v370, %v440
    %442 = vmatmul.f32.gmra.mxu0 %v379
    %v443 = vpop.f32.mrf.mxu0
    %v444 = vadd.f32 %v370, %v443
    %445 = vmatmul.f32.gmra.mxu0 %v382
    %v446 = vpop.f32.mrf.mxu0
    %v447 = vadd.f32 %v370, %v446
    %448 = vmatmul.f32.gmra.mxu0 %v385
    %v449 = vpop.f32.mrf.mxu0
    %v450 = vadd.f32 %v370, %v449
    %451 = vmatmul.f32.gmra.mxu0 %v388
    %v452 = vpop.f32.mrf.mxu0
    %v453 = vadd.f32 %v370, %v452
    %454 = vmatmul.f32.gmra.mxu0 %v391
    %v455 = vpop.f32.mrf.mxu0
    %v456 = vadd.f32 %v370, %v455
    %457 = vmatmul.f32.gmra.mxu0 %v394
    %v458 = vpop.f32.mrf.mxu0
    %v459 = vadd.f32 %v370, %v458
    %460 = vmatmul.f32.gmra.mxu0 %v397
    %v461 = vpop.f32.mrf.mxu0
    %v462 = vadd.f32 %v370, %v461
    %463 = vmatmul.f32.gmra.mxu0 %v400
    %v464 = vpop.f32.mrf.mxu0
    %v465 = vadd.f32 %v370, %v464
    %466 = vmatmul.f32.gmra.mxu0 %v403
    %v467 = vpop.f32.mrf.mxu0
    %v468 = vadd.f32 %v370, %v467
    %469 = vmatmul.f32.gmra.mxu0 %v406
    %v470 = vpop.f32.mrf.mxu0
    %v471 = vadd.f32 %v370, %v470
    %472 = vmatmul.f32.gmra.mxu0 %v409
    %v473 = vpop.f32.mrf.mxu0
    %v474 = vadd.f32 %v370, %v473
    %475 = vmatmul.f32.gmra.mxu0 %v412
    %v476 = vpop.f32.mrf.mxu0
    %v477 = vadd.f32 %v370, %v476
    %478 = vmatmul.f32.gmra.mxu0 %v415
    %v479 = vpop.f32.mrf.mxu0
    %v480 = vadd.f32 %v370, %v479
    %481 = vmatmul.f32.gmra.mxu0 %v418
    %v482 = vpop.f32.mrf.mxu0
    %v483 = vadd.f32 %v370, %v482
    %484 = vdwg.mxu0
    %v485 = vld [vmem:[%s3] sm:$0xff]
    %v486 = vld [vmem:[%s3 + $0x8] sm:$0xff]
    %v487 = vld [vmem:[%s3 + $0x10] sm:$0xff]
    %v488 = vld [vmem:[%s3 + $0x18] sm:$0xff]
    %v489 = vld [vmem:[%s3 + $0x20] sm:$0xff]
    %v490 = vld [vmem:[%s3 + $0x28] sm:$0xff]
    %v491 = vld [vmem:[%s3 + $0x30] sm:$0xff]
    %v492 = vld [vmem:[%s3 + $0x38] sm:$0xff]
    %v494 = vsel %vm371, %v441, 0
    %496 = vmatpush.msra.mxu0 0.0
    %497 = vmatpush.msra.mxu0 0.0
    %498 = vmatpush.msra.mxu0 0.0
    %499 = vmatpush.msra.mxu0 0.0
    %500 = vmatpush.msra.mxu0 0.0
    %501 = vmatpush.msra.mxu0 0.0
    %502 = vmatpush.msra.mxu0 0.0
    %503 = vmatpush.msra.mxu0 0.0
    %504 = vmatpush.msra.mxu0 0.0
    %505 = vmatpush.msra.mxu0 0.0
    %506 = vmatpush.msra.mxu0 0.0
    %507 = vmatpush.msra.mxu0 0.0
    %508 = vmatpush.msra.mxu0 %v492
    %509 = vmatpush.msra.mxu0 %v491
    %510 = vmatpush.msra.mxu0 %v490
    %511 = vmatpush.msra.mxu0 %v489
    %512 = vmatmul.f32.gmra.mxu0 %v494
    %v513 = vpop.f32.mrf.mxu0
    %v514 = vadd.f32 0.0, %v513
    %515 = vdwg.mxu0
    %v517 = vsel %vm371, %v438, 0
    %519 = vmatpush.msra.mxu0 0.0
    %520 = vmatpush.msra.mxu0 0.0
    %521 = vmatpush.msra.mxu0 0.0
    %522 = vmatpush.msra.mxu0 0.0
    %523 = vmatpush.msra.mxu0 0.0
    %524 = vmatpush.msra.mxu0 0.0
    %525 = vmatpush.msra.mxu0 0.0
    %526 = vmatpush.msra.mxu0 0.0
    %527 = vmatpush.msra.mxu0 0.0
    %528 = vmatpush.msra.mxu0 0.0
    %529 = vmatpush.msra.mxu0 0.0
    %530 = vmatpush.msra.mxu0 0.0
    %531 = vmatpush.msra.mxu0 %v488
    %532 = vmatpush.msra.mxu0 %v487
    %533 = vmatpush.msra.mxu0 %v486
    %534 = vmatpush.msra.mxu0 %v485
    %535 = vmatmul.f32.gmra.mxu0 %v517
    %v536 = vpop.f32.mrf.mxu0
    %v537 = vadd.f32 %v514, %v536
    %538 = vdwg.mxu0
    %v539 = vld [vmem:[%s3 + $0x40] sm:$0xff]
    %v540 = vld [vmem:[%s3 + $0x48] sm:$0xff]
    %v541 = vld [vmem:[%s3 + $0x50] sm:$0xff]
    %v542 = vld [vmem:[%s3 + $0x58] sm:$0xff]
    %v544 = vsel %vm371, %v444, 0
    %546 = vmatpush.msra.mxu0 0.0
    %547 = vmatpush.msra.mxu0 0.0
    %548 = vmatpush.msra.mxu0 0.0
    %549 = vmatpush.msra.mxu0 0.0
    %550 = vmatpush.msra.mxu0 0.0
    %551 = vmatpush.msra.mxu0 0.0
    %552 = vmatpush.msra.mxu0 0.0
    %553 = vmatpush.msra.mxu0 0.0
    %554 = vmatpush.msra.mxu0 0.0
    %555 = vmatpush.msra.mxu0 0.0
    %556 = vmatpush.msra.mxu0 0.0
    %557 = vmatpush.msra.mxu0 0.0
    %558 = vmatpush.msra.mxu0 %v542
    %559 = vmatpush.msra.mxu0 %v541
    %560 = vmatpush.msra.mxu0 %v540
    %561 = vmatpush.msra.mxu0 %v539
    %562 = vmatmul.f32.gmra.mxu0 %v544
    %v563 = vpop.f32.mrf.mxu0
    %v564 = vadd.f32 0.0, %v563
    %565 = vdwg.mxu0
    %v566 = vadd.f32 %v537, %v564
    %v567 = vld [vmem:[%s3 + $0x60] sm:$0xff]
    %v568 = vld [vmem:[%s3 + $0x68] sm:$0xff]
    %v569 = vld [vmem:[%s3 + $0x70] sm:$0xff]
    %v570 = vld [vmem:[%s3 + $0x78] sm:$0xff]
    %v572 = vsel %vm371, %v447, 0
    %574 = vmatpush.msra.mxu0 0.0
    %575 = vmatpush.msra.mxu0 0.0
    %576 = vmatpush.msra.mxu0 0.0
    %577 = vmatpush.msra.mxu0 0.0
    %578 = vmatpush.msra.mxu0 0.0
    %579 = vmatpush.msra.mxu0 0.0
    %580 = vmatpush.msra.mxu0 0.0
    %581 = vmatpush.msra.mxu0 0.0
    %582 = vmatpush.msra.mxu0 0.0
    %583 = vmatpush.msra.mxu0 0.0
    %584 = vmatpush.msra.mxu0 0.0
    %585 = vmatpush.msra.mxu0 0.0
    %586 = vmatpush.msra.mxu0 %v570
    %587 = vmatpush.msra.mxu0 %v569
    %588 = vmatpush.msra.mxu0 %v568
    %589 = vmatpush.msra.mxu0 %v567
    %590 = vmatmul.f32.gmra.mxu0 %v572
    %v591 = vpop.f32.mrf.mxu0
    %v592 = vadd.f32 0.0, %v591
    %593 = vdwg.mxu0
    %v594 = vadd.f32 %v566, %v592
    %v595 = vld [vmem:[%s3 + $0x80] sm:$0xff]
    %v596 = vld [vmem:[%s3 + $0x88] sm:$0xff]
    %v597 = vld [vmem:[%s3 + $0x90] sm:$0xff]
    %v598 = vld [vmem:[%s3 + $0x98] sm:$0xff]
    %v600 = vsel %vm371, %v450, 0
    %602 = vmatpush.msra.mxu0 0.0
    %603 = vmatpush.msra.mxu0 0.0
    %604 = vmatpush.msra.mxu0 0.0
    %605 = vmatpush.msra.mxu0 0.0
    %606 = vmatpush.msra.mxu0 0.0
    %607 = vmatpush.msra.mxu0 0.0
    %608 = vmatpush.msra.mxu0 0.0
    %609 = vmatpush.msra.mxu0 0.0
    %610 = vmatpush.msra.mxu0 0.0
    %611 = vmatpush.msra.mxu0 0.0
    %612 = vmatpush.msra.mxu0 0.0
    %613 = vmatpush.msra.mxu0 0.0
    %614 = vmatpush.msra.mxu0 %v598
    %615 = vmatpush.msra.mxu0 %v597
    %616 = vmatpush.msra.mxu0 %v596
    %617 = vmatpush.msra.mxu0 %v595
    %618 = vmatmul.f32.gmra.mxu0 %v600
    %v619 = vpop.f32.mrf.mxu0
    %v620 = vadd.f32 0.0, %v619
    %621 = vdwg.mxu0
    %v622 = vadd.f32 %v594, %v620
    %v623 = vld [vmem:[%s3 + $0xa0] sm:$0xff]
    %v624 = vld [vmem:[%s3 + $0xa8] sm:$0xff]
    %v625 = vld [vmem:[%s3 + $0xb0] sm:$0xff]
    %v626 = vld [vmem:[%s3 + $0xb8] sm:$0xff]
    %v628 = vsel %vm371, %v453, 0
    %630 = vmatpush.msra.mxu0 0.0
    %631 = vmatpush.msra.mxu0 0.0
    %632 = vmatpush.msra.mxu0 0.0
    %633 = vmatpush.msra.mxu0 0.0
    %634 = vmatpush.msra.mxu0 0.0
    %635 = vmatpush.msra.mxu0 0.0
    %636 = vmatpush.msra.mxu0 0.0
    %637 = vmatpush.msra.mxu0 0.0
    %638 = vmatpush.msra.mxu0 0.0
    %639 = vmatpush.msra.mxu0 0.0
    %640 = vmatpush.msra.mxu0 0.0
    %641 = vmatpush.msra.mxu0 0.0
    %642 = vmatpush.msra.mxu0 %v626
    %643 = vmatpush.msra.mxu0 %v625
    %644 = vmatpush.msra.mxu0 %v624
    %645 = vmatpush.msra.mxu0 %v623
    %646 = vmatmul.f32.gmra.mxu0 %v628
    %v647 = vpop.f32.mrf.mxu0
    %v648 = vadd.f32 0.0, %v647
    %649 = vdwg.mxu0
    %v650 = vadd.f32 %v622, %v648
    %v651 = vld [vmem:[%s3 + $0xc0] sm:$0xff]
    %v652 = vld [vmem:[%s3 + $0xc8] sm:$0xff]
    %v653 = vld [vmem:[%s3 + $0xd0] sm:$0xff]
    %v654 = vld [vmem:[%s3 + $0xd8] sm:$0xff]
    %v656 = vsel %vm371, %v456, 0
    %658 = vmatpush.msra.mxu0 0.0
    %659 = vmatpush.msra.mxu0 0.0
    %660 = vmatpush.msra.mxu0 0.0
    %661 = vmatpush.msra.mxu0 0.0
    %662 = vmatpush.msra.mxu0 0.0
    %663 = vmatpush.msra.mxu0 0.0
    %664 = vmatpush.msra.mxu0 0.0
    %665 = vmatpush.msra.mxu0 0.0
    %666 = vmatpush.msra.mxu0 0.0
    %667 = vmatpush.msra.mxu0 0.0
    %668 = vmatpush.msra.mxu0 0.0
    %669 = vmatpush.msra.mxu0 0.0
    %670 = vmatpush.msra.mxu0 %v654
    %671 = vmatpush.msra.mxu0 %v653
    %672 = vmatpush.msra.mxu0 %v652
    %673 = vmatpush.msra.mxu0 %v651
    %674 = vmatmul.f32.gmra.mxu0 %v656
    %v675 = vpop.f32.mrf.mxu0
    %v676 = vadd.f32 0.0, %v675
    %677 = vdwg.mxu0
    %v678 = vadd.f32 %v650, %v676
    %v679 = vld [vmem:[%s3 + $0xe0] sm:$0xff]
    %v680 = vld [vmem:[%s3 + $0xe8] sm:$0xff]
    %v681 = vld [vmem:[%s3 + $0xf0] sm:$0xff]
    %v682 = vld [vmem:[%s3 + $0xf8] sm:$0xff]
    %v684 = vsel %vm371, %v459, 0
    %686 = vmatpush.msra.mxu0 0.0
    %687 = vmatpush.msra.mxu0 0.0
    %688 = vmatpush.msra.mxu0 0.0
    %689 = vmatpush.msra.mxu0 0.0
    %690 = vmatpush.msra.mxu0 0.0
    %691 = vmatpush.msra.mxu0 0.0
    %692 = vmatpush.msra.mxu0 0.0
    %693 = vmatpush.msra.mxu0 0.0
    %694 = vmatpush.msra.mxu0 0.0
    %695 = vmatpush.msra.mxu0 0.0
    %696 = vmatpush.msra.mxu0 0.0
    %697 = vmatpush.msra.mxu0 0.0
    %698 = vmatpush.msra.mxu0 %v682
    %699 = vmatpush.msra.mxu0 %v681
    %700 = vmatpush.msra.mxu0 %v680
    %701 = vmatpush.msra.mxu0 %v679
    %702 = vmatmul.f32.gmra.mxu0 %v684
    %v703 = vpop.f32.mrf.mxu0
    %v704 = vadd.f32 0.0, %v703
    %705 = vdwg.mxu0
    %v706 = vadd.f32 %v678, %v704
    %v707 = vld [vmem:[%s3 + $0x100] sm:$0xff]
    %v708 = vld [vmem:[%s3 + $0x108] sm:$0xff]
    %v709 = vld [vmem:[%s3 + $0x110] sm:$0xff]
    %v710 = vld [vmem:[%s3 + $0x118] sm:$0xff]
    %v712 = vsel %vm371, %v462, 0
    %714 = vmatpush.msra.mxu0 0.0
    %715 = vmatpush.msra.mxu0 0.0
    %716 = vmatpush.msra.mxu0 0.0
    %717 = vmatpush.msra.mxu0 0.0
    %718 = vmatpush.msra.mxu0 0.0
    %719 = vmatpush.msra.mxu0 0.0
    %720 = vmatpush.msra.mxu0 0.0
    %721 = vmatpush.msra.mxu0 0.0
    %722 = vmatpush.msra.mxu0 0.0
    %723 = vmatpush.msra.mxu0 0.0
    %724 = vmatpush.msra.mxu0 0.0
    %725 = vmatpush.msra.mxu0 0.0
    %726 = vmatpush.msra.mxu0 %v710
    %727 = vmatpush.msra.mxu0 %v709
    %728 = vmatpush.msra.mxu0 %v708
    %729 = vmatpush.msra.mxu0 %v707
    %730 = vmatmul.f32.gmra.mxu0 %v712
    %v731 = vpop.f32.mrf.mxu0
    %v732 = vadd.f32 0.0, %v731
    %733 = vdwg.mxu0
    %v734 = vadd.f32 %v706, %v732
    %v735 = vld [vmem:[%s3 + $0x120] sm:$0xff]
    %v736 = vld [vmem:[%s3 + $0x128] sm:$0xff]
    %v737 = vld [vmem:[%s3 + $0x130] sm:$0xff]
    %v738 = vld [vmem:[%s3 + $0x138] sm:$0xff]
    %v740 = vsel %vm371, %v465, 0
    %742 = vmatpush.msra.mxu0 0.0
    %743 = vmatpush.msra.mxu0 0.0
    %744 = vmatpush.msra.mxu0 0.0
    %745 = vmatpush.msra.mxu0 0.0
    %746 = vmatpush.msra.mxu0 0.0
    %747 = vmatpush.msra.mxu0 0.0
    %748 = vmatpush.msra.mxu0 0.0
    %749 = vmatpush.msra.mxu0 0.0
    %750 = vmatpush.msra.mxu0 0.0
    %751 = vmatpush.msra.mxu0 0.0
    %752 = vmatpush.msra.mxu0 0.0
    %753 = vmatpush.msra.mxu0 0.0
    %754 = vmatpush.msra.mxu0 %v738
    %755 = vmatpush.msra.mxu0 %v737
    %756 = vmatpush.msra.mxu0 %v736
    %757 = vmatpush.msra.mxu0 %v735
    %758 = vmatmul.f32.gmra.mxu0 %v740
    %v759 = vpop.f32.mrf.mxu0
    %v760 = vadd.f32 0.0, %v759
    %761 = vdwg.mxu0
    %v762 = vadd.f32 %v734, %v760
    %v763 = vld [vmem:[%s3 + $0x140] sm:$0xff]
    %v764 = vld [vmem:[%s3 + $0x148] sm:$0xff]
    %v765 = vld [vmem:[%s3 + $0x150] sm:$0xff]
    %v766 = vld [vmem:[%s3 + $0x158] sm:$0xff]
    %v768 = vsel %vm371, %v468, 0
    %770 = vmatpush.msra.mxu0 0.0
    %771 = vmatpush.msra.mxu0 0.0
    %772 = vmatpush.msra.mxu0 0.0
    %773 = vmatpush.msra.mxu0 0.0
    %774 = vmatpush.msra.mxu0 0.0
    %775 = vmatpush.msra.mxu0 0.0
    %776 = vmatpush.msra.mxu0 0.0
    %777 = vmatpush.msra.mxu0 0.0
    %778 = vmatpush.msra.mxu0 0.0
    %779 = vmatpush.msra.mxu0 0.0
    %780 = vmatpush.msra.mxu0 0.0
    %781 = vmatpush.msra.mxu0 0.0
    %782 = vmatpush.msra.mxu0 %v766
    %783 = vmatpush.msra.mxu0 %v765
    %784 = vmatpush.msra.mxu0 %v764
    %785 = vmatpush.msra.mxu0 %v763
    %786 = vmatmul.f32.gmra.mxu0 %v768
    %v787 = vpop.f32.mrf.mxu0
    %v788 = vadd.f32 0.0, %v787
    %789 = vdwg.mxu0
    %v790 = vadd.f32 %v762, %v788
    %v791 = vld [vmem:[%s3 + $0x160] sm:$0xff]
    %v792 = vld [vmem:[%s3 + $0x168] sm:$0xff]
    %v793 = vld [vmem:[%s3 + $0x170] sm:$0xff]
    %v794 = vld [vmem:[%s3 + $0x178] sm:$0xff]
    %v796 = vsel %vm371, %v471, 0
    %798 = vmatpush.msra.mxu0 0.0
    %799 = vmatpush.msra.mxu0 0.0
    %800 = vmatpush.msra.mxu0 0.0
    %801 = vmatpush.msra.mxu0 0.0
    %802 = vmatpush.msra.mxu0 0.0
    %803 = vmatpush.msra.mxu0 0.0
    %804 = vmatpush.msra.mxu0 0.0
    %805 = vmatpush.msra.mxu0 0.0
    %806 = vmatpush.msra.mxu0 0.0
    %807 = vmatpush.msra.mxu0 0.0
    %808 = vmatpush.msra.mxu0 0.0
    %809 = vmatpush.msra.mxu0 0.0
    %810 = vmatpush.msra.mxu0 %v794
    %811 = vmatpush.msra.mxu0 %v793
    %812 = vmatpush.msra.mxu0 %v792
    %813 = vmatpush.msra.mxu0 %v791
    %814 = vmatmul.f32.gmra.mxu0 %v796
    %v815 = vpop.f32.mrf.mxu0
    %v816 = vadd.f32 0.0, %v815
    %817 = vdwg.mxu0
    %v818 = vadd.f32 %v790, %v816
    %v819 = vld [vmem:[%s3 + $0x180] sm:$0xff]
    %v820 = vld [vmem:[%s3 + $0x188] sm:$0xff]
    %v821 = vld [vmem:[%s3 + $0x190] sm:$0xff]
    %v822 = vld [vmem:[%s3 + $0x198] sm:$0xff]
    %v824 = vsel %vm371, %v474, 0
    %826 = vmatpush.msra.mxu0 0.0
    %827 = vmatpush.msra.mxu0 0.0
    %828 = vmatpush.msra.mxu0 0.0
    %829 = vmatpush.msra.mxu0 0.0
    %830 = vmatpush.msra.mxu0 0.0
    %831 = vmatpush.msra.mxu0 0.0
    %832 = vmatpush.msra.mxu0 0.0
    %833 = vmatpush.msra.mxu0 0.0
    %834 = vmatpush.msra.mxu0 0.0
    %835 = vmatpush.msra.mxu0 0.0
    %836 = vmatpush.msra.mxu0 0.0
    %837 = vmatpush.msra.mxu0 0.0
    %838 = vmatpush.msra.mxu0 %v822
    %839 = vmatpush.msra.mxu0 %v821
    %840 = vmatpush.msra.mxu0 %v820
    %841 = vmatpush.msra.mxu0 %v819
    %842 = vmatmul.f32.gmra.mxu0 %v824
    %v843 = vpop.f32.mrf.mxu0
    %v844 = vadd.f32 0.0, %v843
    %845 = vdwg.mxu0
    %v846 = vadd.f32 %v818, %v844
    %v847 = vld [vmem:[%s3 + $0x1a0] sm:$0xff]
    %v848 = vld [vmem:[%s3 + $0x1a8] sm:$0xff]
    %v849 = vld [vmem:[%s3 + $0x1b0] sm:$0xff]
    %v850 = vld [vmem:[%s3 + $0x1b8] sm:$0xff]
    %v852 = vsel %vm371, %v477, 0
    %854 = vmatpush.msra.mxu0 0.0
    %855 = vmatpush.msra.mxu0 0.0
    %856 = vmatpush.msra.mxu0 0.0
    %857 = vmatpush.msra.mxu0 0.0
    %858 = vmatpush.msra.mxu0 0.0
    %859 = vmatpush.msra.mxu0 0.0
    %860 = vmatpush.msra.mxu0 0.0
    %861 = vmatpush.msra.mxu0 0.0
    %862 = vmatpush.msra.mxu0 0.0
    %863 = vmatpush.msra.mxu0 0.0
    %864 = vmatpush.msra.mxu0 0.0
    %865 = vmatpush.msra.mxu0 0.0
    %866 = vmatpush.msra.mxu0 %v850
    %867 = vmatpush.msra.mxu0 %v849
    %868 = vmatpush.msra.mxu0 %v848
    %869 = vmatpush.msra.mxu0 %v847
    %870 = vmatmul.f32.gmra.mxu0 %v852
    %v871 = vpop.f32.mrf.mxu0
    %v872 = vadd.f32 0.0, %v871
    %873 = vdwg.mxu0
    %v874 = vadd.f32 %v846, %v872
    %v875 = vld [vmem:[%s3 + $0x1c0] sm:$0xff]
    %v876 = vld [vmem:[%s3 + $0x1c8] sm:$0xff]
    %v877 = vld [vmem:[%s3 + $0x1d0] sm:$0xff]
    %v878 = vld [vmem:[%s3 + $0x1d8] sm:$0xff]
    %v880 = vsel %vm371, %v480, 0
    %882 = vmatpush.msra.mxu0 0.0
    %883 = vmatpush.msra.mxu0 0.0
    %884 = vmatpush.msra.mxu0 0.0
    %885 = vmatpush.msra.mxu0 0.0
    %886 = vmatpush.msra.mxu0 0.0
    %887 = vmatpush.msra.mxu0 0.0
    %888 = vmatpush.msra.mxu0 0.0
    %889 = vmatpush.msra.mxu0 0.0
    %890 = vmatpush.msra.mxu0 0.0
    %891 = vmatpush.msra.mxu0 0.0
    %892 = vmatpush.msra.mxu0 0.0
    %893 = vmatpush.msra.mxu0 0.0
    %894 = vmatpush.msra.mxu0 %v878
    %895 = vmatpush.msra.mxu0 %v877
    %896 = vmatpush.msra.mxu0 %v876
    %897 = vmatpush.msra.mxu0 %v875
    %898 = vmatmul.f32.gmra.mxu0 %v880
    %v899 = vpop.f32.mrf.mxu0
    %v900 = vadd.f32 0.0, %v899
    %901 = vdwg.mxu0
    %v902 = vadd.f32 %v874, %v900
    %v903 = vld [vmem:[%s3 + $0x1e0] sm:$0xff]
    %v904 = vld [vmem:[%s3 + $0x1e8] sm:$0xff]
    %v905 = vld [vmem:[%s3 + $0x1f0] sm:$0xff]
    %v906 = vld [vmem:[%s3 + $0x1f8] sm:$0xff]
    %v908 = vsel %vm371, %v483, 0
    %910 = vmatpush.msra.mxu0 0.0
    %911 = vmatpush.msra.mxu0 0.0
    %912 = vmatpush.msra.mxu0 0.0
    %913 = vmatpush.msra.mxu0 0.0
    %914 = vmatpush.msra.mxu0 0.0
    %915 = vmatpush.msra.mxu0 0.0
    %916 = vmatpush.msra.mxu0 0.0
    %917 = vmatpush.msra.mxu0 0.0
    %918 = vmatpush.msra.mxu0 0.0
    %919 = vmatpush.msra.mxu0 0.0
    %920 = vmatpush.msra.mxu0 0.0
    %921 = vmatpush.msra.mxu0 0.0
    %922 = vmatpush.msra.mxu0 %v906
    %923 = vmatpush.msra.mxu0 %v905
    %924 = vmatpush.msra.mxu0 %v904
    %925 = vmatpush.msra.mxu0 %v903
    %926 = vmatmul.f32.gmra.mxu0 %v908
    %v927 = vpop.f32.mrf.mxu0
    %v928 = vadd.f32 0.0, %v927
    %929 = vdwg.mxu0
    %v930 = vadd.f32 %v902, %v928
    %v931 = vperm.slane %v96, 0
    %v932 = vadd.f32 %v930, %v931
    %v933 = vmax.f32 %v932, 0.0
    %v934 = vperm.slane %v97, 0
    %vm935 = vcmask 523264
    %v937 = vsel %vm935, %v933, 0
    %939 = vmatpush.msra.mxu0 0.0
    %940 = vmatpush.msra.mxu0 0.0
    %941 = vmatpush.msra.mxu0 0.0
    %942 = vmatpush.msra.mxu0 0.0
    %943 = vmatpush.msra.mxu0 0.0
    %944 = vmatpush.msra.mxu0 0.0
    %945 = vmatpush.msra.mxu0 0.0
    %946 = vmatpush.msra.mxu0 0.0
    %947 = vmatpush.msra.mxu0 %v78
    %948 = vmatpush.msra.mxu0 %v77
    %949 = vmatpush.msra.mxu0 %v76
    %950 = vmatpush.msra.mxu0 %v75
    %951 = vmatpush.msra.mxu0 %v74
    %952 = vmatpush.msra.mxu0 %v73
    %953 = vmatpush.msra.mxu0 %v72
    %954 = vmatpush.msra.mxu0 %v71
    %955 = vmatmul.f32.gmra.mxu0 %v937
    %v956 = vpop.f32.mrf.mxu0
    %v957 = vadd.f32 %v934, %v956
    %958 = vdwg.mxu0
    %v959 = vmax.f32 %v957, 0.0
    %v960 = vperm.slane %v98, 0
    %v962 = vsel %vm371, %v959, 0
    %964 = vmatpush.msra.mxu0 0.0
    %965 = vmatpush.msra.mxu0 0.0
    %966 = vmatpush.msra.mxu0 0.0
    %967 = vmatpush.msra.mxu0 0.0
    %968 = vmatpush.msra.mxu0 0.0
    %969 = vmatpush.msra.mxu0 0.0
    %970 = vmatpush.msra.mxu0 0.0
    %971 = vmatpush.msra.mxu0 0.0
    %972 = vmatpush.msra.mxu0 0.0
    %973 = vmatpush.msra.mxu0 0.0
    %974 = vmatpush.msra.mxu0 0.0
    %975 = vmatpush.msra.mxu0 0.0
    %976 = vmatpush.msra.mxu0 %v105
    %977 = vmatpush.msra.mxu0 %v104
    %978 = vmatpush.msra.mxu0 %v103
    %979 = vmatpush.msra.mxu0 %v102
    %980 = vmatmul.f32.gmra.mxu0 %v962
    %v981 = vpop.f32.mrf.mxu0
    %v982 = vadd.f32 %v960, %v981
    %983 = vdwg.mxu0
    %v985 = vsel %vm371, 0.0, 0
    %987 = vmatpush.msra.mxu0 0.0
    %988 = vmatpush.msra.mxu0 0.0
    %989 = vmatpush.msra.mxu0 0.0
    %990 = vmatpush.msra.mxu0 0.0
    %991 = vmatpush.msra.mxu0 0.0
    %992 = vmatpush.msra.mxu0 0.0
    %993 = vmatpush.msra.mxu0 0.0
    %994 = vmatpush.msra.mxu0 0.0
    %995 = vmatpush.msra.mxu0 0.0
    %996 = vmatpush.msra.mxu0 0.0
    %997 = vmatpush.msra.mxu0 0.0
    %998 = vmatpush.msra.mxu0 0.0
    %999 = vmatpush.msra.mxu0 %v109
    %1000 = vmatpush.msra.mxu0 %v108
    %1001 = vmatpush.msra.mxu0 %v107
    %1002 = vmatpush.msra.mxu0 %v106
    %1003 = vmatmul.f32.gmra.mxu0 %v985
    %v1004 = vpop.f32.mrf.mxu0
    %v1005 = vadd.f32 0.0, %v1004
    %1006 = vdwg.mxu0
    %v1007 = vadd.f32 %v982, %v1005
    %v1008 = vmul.f32 %v1007, 0.5
    %v1009 = vtanh.pop %v1008
    %v1010 = vadd.f32 %v1009, 1.0
    %v1011 = vmul.f32 %v1010, 0.5
    %v1012 = vtanh.pop %v1007
    %v1013 = vmul.f32 %v1011, 0.0
    %1015 = vrot.lane.b32.xlu0 %v1012, 64
    %v1016 = vpop.permute.xlu0 %1015
    %v1018 = vmul.f32 %v1011, %v1016
    %1020 = vrot.lane.b32.xlu0 %v1018, 32
    %v1021 = vpop.permute.xlu0 %1020
    %v1023 = vadd.f32 %v1013, %v1021
    %v1024 = vtanh.pop %v1023
    %1026 = vrot.lane.b32.xlu0 %v1024, 64
    %v1027 = vpop.permute.xlu0 %1026
    %v1029 = vmul.f32 %v1011, %v1027
    %1031 = vrot.lane.b32.xlu0 %v1029, 32
    %v1032 = vpop.permute.xlu0 %1031
    %v1033 = vsel %vm371, %v1032, 0
    %1035 = vmatpush.msra.mxu0 0.0
    %1036 = vmatpush.msra.mxu0 0.0
    %1037 = vmatpush.msra.mxu0 0.0
    %1038 = vmatpush.msra.mxu0 0.0
    %1039 = vmatpush.msra.mxu0 0.0
    %1040 = vmatpush.msra.mxu0 0.0
    %1041 = vmatpush.msra.mxu0 0.0
    %1042 = vmatpush.msra.mxu0 0.0
    %1043 = vmatpush.msra.mxu0 0.0
    %1044 = vmatpush.msra.mxu0 0.0
    %1045 = vmatpush.msra.mxu0 0.0
    %1046 = vmatpush.msra.mxu0 0.0
    %1047 = vmatpush.msra.mxu0 %v109
    %1048 = vmatpush.msra.mxu0 %v108
    %1049 = vmatpush.msra.mxu0 %v107
    %1050 = vmatpush.msra.mxu0 %v106
    %1051 = vmatmul.f32.gmra.mxu0 %v1033
    %v1052 = vpop.f32.mrf.mxu0
    %v1053 = vadd.f32 0.0, %v1052
    %1054 = vdwg.mxu0
    %v1056 = vrot.slane %v1053, 4
    %v1058 = vadd.f32 %v982, %v1056
    %v1059 = vmul.f32 %v1058, 0.5
    %v1060 = vtanh.pop %v1059
    %v1061 = vadd.f32 %v1060, 1.0
    %v1062 = vmul.f32 %v1061, 0.5
    %v1063 = vtanh.pop %v1058
    %v1065 = vrot.slane %v1023, 4
    %v1067 = vmul.f32 %v1062, %v1065
    %1069 = vrot.lane.b32.xlu0 %v1063, 64
    %v1070 = vpop.permute.xlu0 %1069
    %v1072 = vmul.f32 %v1062, %v1070
    %1074 = vrot.lane.b32.xlu0 %v1072, 32
    %v1075 = vpop.permute.xlu0 %1074
    %v1077 = vadd.f32 %v1067, %v1075
    %v1078 = vtanh.pop %v1077
    %1080 = vrot.lane.b32.xlu0 %v1078, 64
    %v1081 = vpop.permute.xlu0 %1080
    %v1083 = vmul.f32 %v1062, %v1081
    %v1084 = vrot.slane %v1029, 3
    %v1087 = vrot.slane %v1083, 6
    %vm1089 = vcmask 1040384
    %v1090 = vsel %vm1089, %v1084, %v1087
    %v1091 = vld [vmem:[%s3 + $0x200] sm:$0xff]
    %v1092 = vld [vmem:[%s3 + $0x208] sm:$0xff]
    %v1093 = vld [vmem:[%s3 + $0x210] sm:$0xff]
    %v1094 = vld [vmem:[%s3 + $0x218] sm:$0xff]
    %v1095 = vld [vmem:[%s3 + $0x220] sm:$0xff]
    %v1096 = vld [vmem:[%s3 + $0x228] sm:$0xff]
    %v1097 = vld [vmem:[%s3 + $0x230] sm:$0xff]
    %v1098 = vld [vmem:[%s3 + $0x238] sm:$0xff]
    %v1099 = vld [vmem:[%s3 + $0x240] sm:$0xff]
    %v1100 = vld [vmem:[%s3 + $0x248] sm:$0xff]
    %v1101 = vld [vmem:[%s3 + $0x250] sm:$0xff]
    %v1102 = vld [vmem:[%s3 + $0x258] sm:$0xff]
    %v1103 = vld [vmem:[%s3 + $0x260] sm:$0xff]
    %v1104 = vld [vmem:[%s3 + $0x268] sm:$0xff]
    %v1105 = vld [vmem:[%s3 + $0x270] sm:$0xff]
    %v1106 = vld [vmem:[%s3 + $0x278] sm:$0xff]
    %v1107 = vld [vmem:[%s3 + $0x280] sm:$0xff]
    %v1108 = vld [vmem:[%s3 + $0x288] sm:$0xff]
    %v1109 = vld [vmem:[%s3 + $0x290] sm:$0xff]
    %v1110 = vld [vmem:[%s3 + $0x298] sm:$0xff]
    %v1111 = vperm.slane %v99, 0
    %1113 = vrot.lane.b32.xlu0 %v1090, 32
    %v1114 = vpop.permute.xlu0 %1113
    %v1115 = vsel %vm371, %v1114, 0
    %1117 = vmatpush.msra.mxu0 0.0
    %1118 = vmatpush.msra.mxu0 0.0
    %1119 = vmatpush.msra.mxu0 0.0
    %1120 = vmatpush.msra.mxu0 0.0
    %1121 = vmatpush.msra.mxu0 0.0
    %1122 = vmatpush.msra.mxu0 0.0
    %1123 = vmatpush.msra.mxu0 0.0
    %1124 = vmatpush.msra.mxu0 0.0
    %1125 = vmatpush.msra.mxu0 0.0
    %1126 = vmatpush.msra.mxu0 0.0
    %1127 = vmatpush.msra.mxu0 0.0
    %1128 = vmatpush.msra.mxu0 0.0
    %1129 = vmatpush.msra.mxu0 %v1094
    %1130 = vmatpush.msra.mxu0 %v1093
    %1131 = vmatpush.msra.mxu0 %v1092
    %1132 = vmatpush.msra.mxu0 %v1091
    %1133 = vmatmul.f32.gmra.mxu0 %v1115
    %v1134 = vpop.f32.mrf.mxu0
    %v1135 = vadd.f32 %v1111, %v1134
    %1136 = vdwg.mxu0
    %v1137 = vmax.f32 %v1135, 0.0
    %v1138 = vperm.slane %v100, 0
    %v1140 = vsel %vm935, %v1137, 0
    %1142 = vmatpush.msra.mxu0 0.0
    %1143 = vmatpush.msra.mxu0 0.0
    %1144 = vmatpush.msra.mxu0 0.0
    %1145 = vmatpush.msra.mxu0 0.0
    %1146 = vmatpush.msra.mxu0 0.0
    %1147 = vmatpush.msra.mxu0 0.0
    %1148 = vmatpush.msra.mxu0 0.0
    %1149 = vmatpush.msra.mxu0 0.0
    %1150 = vmatpush.msra.mxu0 %v1102
    %1151 = vmatpush.msra.mxu0 %v1101
    %1152 = vmatpush.msra.mxu0 %v1100
    %1153 = vmatpush.msra.mxu0 %v1099
    %1154 = vmatpush.msra.mxu0 %v1098
    %1155 = vmatpush.msra.mxu0 %v1097
    %1156 = vmatpush.msra.mxu0 %v1096
    %1157 = vmatpush.msra.mxu0 %v1095
    %1158 = vmatmul.f32.gmra.mxu0 %v1140
    %v1159 = vpop.f32.mrf.mxu0
    %v1160 = vadd.f32 %v1138, %v1159
    %1161 = vdwg.mxu0
    %v1162 = vmax.f32 %v1160, 0.0
    %v1163 = vperm.slane %v101, 0
    %v1165 = vsel %vm935, %v1162, 0
    %1167 = vmatpush.msra.mxu0 0.0
    %1168 = vmatpush.msra.mxu0 0.0
    %1169 = vmatpush.msra.mxu0 0.0
    %1170 = vmatpush.msra.mxu0 0.0
    %1171 = vmatpush.msra.mxu0 0.0
    %1172 = vmatpush.msra.mxu0 0.0
    %1173 = vmatpush.msra.mxu0 0.0
    %1174 = vmatpush.msra.mxu0 0.0
    %1175 = vmatpush.msra.mxu0 %v1110
    %1176 = vmatpush.msra.mxu0 %v1109
    %1177 = vmatpush.msra.mxu0 %v1108
    %1178 = vmatpush.msra.mxu0 %v1107
    %1179 = vmatpush.msra.mxu0 %v1106
    %1180 = vmatpush.msra.mxu0 %v1105
    %1181 = vmatpush.msra.mxu0 %v1104
    %1182 = vmatpush.msra.mxu0 %v1103
    %1183 = vmatmul.f32.gmra.mxu0 %v1165
    %v1184 = vpop.f32.mrf.mxu0
    %v1185 = vadd.f32 %v1163, %v1184
    %1186 = vdwg.mxu0
    %v1187 = vmul.f32 %v1185, 0.5
    %v1188 = vtanh.pop %v1187
    %v1189 = vadd.f32 %v1188, 1.0
    %v1190 = vmul.f32 %v1189, 0.5
    %v1191 = vld [vmem:[%s1] sm:$0x3]
    %1193 = vrot.lane.b32.xlu0 %v1190, 96
    %v1194 = vpop.permute.xlu0 %1193
    %v1196 = vmul.f32 %v1191, %v1194
    %v1197 = vadd.f32 %v1185, %v1196
    %v1198 = vmax.f32 %v1197, 0.0
    %v1199 = vand.u32 2147483647, %v1197
    %v1200 = vsub.f32 0.0, %v1199
    %v1201 = vmul.f32 %v1200, 1.442695
    %v1202 = vpow.pop %v1201
    %v1203 = vadd.f32 %v1202, 1.0
    %v1204 = vlog2.pop %v1203
    %v1205 = vmul.f32 %v1204, 0.6931472
    %v1206 = vadd.f32 %v1198, %v1205
    %1207 = vrot.lane.b32.xlu0 %v1190, 80
    %v1208 = vpop.permute.xlu0 %1207
    %v1210 = vmul.f32 %v1191, %v1208
    %1212 = vrot.lane.b32.xlu0 %v1210, 16
    %v1213 = vpop.permute.xlu0 %1212
    %v1215 = vadd.f32 %v1185, %v1213
    %v1216 = vmax.f32 %v1215, 0.0
    %v1217 = vand.u32 2147483647, %v1215
    %v1218 = vsub.f32 0.0, %v1217
    %v1219 = vmul.f32 %v1218, 1.442695
    %v1220 = vpow.pop %v1219
    %v1221 = vadd.f32 %v1220, 1.0
    %v1222 = vlog2.pop %v1221
    %v1223 = vmul.f32 %v1222, 0.6931472
    %v1224 = vadd.f32 %v1216, %v1223
    %v1226 = vrot.slane %v1224, 6
    %1227 = vrot.lane.b32.xlu0 %v1226, 112
    %v1228 = vpop.permute.xlu0 %1227
    %vm1230 = vcmask 1041408
    %v1231 = vsel %vm1230, %v1206, %v1228
    %vm1232 = vcmask 125952
    %1233 = vst.msk [vmem:[#allocation2] sm:$0xf] %vm1232, %v1231
    // Predicated region
    $region18: #{gcn_lstm_forward.1} parent=1 // pred_check
      _
    $region19: #{gcn_lstm_forward.1} parent=1 // pred_check_branch
      %1235 = sbr.rel (0) target = $region21
    $region20: #{gcn_lstm_forward.1} parent=1 // pred_region
      %1237 = vsyncadd [#allocation3], 0
      %s1239 = sshll.u32 [#allocation2], 4
      %s1240 = int_to_ptr.vmem [resolvable:$true] %s1239
      %s1241 = sshll.u32 %s4, 4
      %s1242 = int_to_ptr.hbm [resolvable:$true] %s1241
      %1244 = dma.vmem_to_hbm [thread:$0]  %s1240, 64, %s1242, [#allocation3]
    $region21: #{gcn_lstm_forward.1} parent=1 // pred_fallthru
      _
    // Predicated region
    $region22: #{gcn_lstm_forward.1} parent=1 // pred_check
      _
    $region23: #{gcn_lstm_forward.1} parent=1 // pred_check_branch
      %1246 = sbr.rel (0) target = $region25
    $region24: #{gcn_lstm_forward.1} parent=1 // pred_region
      %1248 = dma.done [#allocation3], 64
    $region25: #{gcn_lstm_forward.1} parent=1 // pred_fallthru
      _
    %1249 = vsyncpa [#allocation3], 1

</llo_original>
